<compile_context>
chip_gen: v7x
topology: tpu7x:2x2x1
jax: 0.10.0
libtpu: 0.0.40
codegen_flags: <defaults>
</compile_context>

<pallas_src>
import functools

import jax
import jax.numpy as jnp
from jax.experimental import pallas as pl
from jax.experimental.pallas import tpu as pltpu


def _round_up(n, m):
    return ((n + m - 1) // m) * m


# ---------------------------------------------------------------------------
# Kernel
# ---------------------------------------------------------------------------
def _mlp_kernel(x_ref, ew1_ref, w2_ref, b2_ref, o_ref, *, c_pad, precision):
    """sigmoid(relu(onehot(x) @ EW1) @ W2 + b2) for one batch tile.

    EW1 already contains E_stacked @ W1 with b1/num_vars folded into its real rows,
    and x already carries the per-variable category offsets.
    """
    tb, num_vars = x_ref.shape
    cdt = ew1_ref.dtype

    # One-hot over the concatenated category axis: boolean compares OR-ed together
    # (per-variable offsets make the hits disjoint), single cast to the MXU dtype.
    col_ids = jax.lax.broadcasted_iota(jnp.int32, (tb, c_pad), 1)
    hit = col_ids == x_ref[:, 0:1]
    for v in range(1, num_vars):
        hit = hit | (col_ids == x_ref[:, v:v + 1])
    onehot = hit.astype(cdt)

    # Fused embedding + fc1 + b1 (exact selection: onehot rows are 0/1), then ReLU (f32).
    h = jnp.dot(onehot, ew1_ref[...],
                preferred_element_type=jnp.float32, precision=precision)
    h = jnp.maximum(h, 0.0)

    # fc2 + bias + sigmoid (EUP); epilogue stays f32 (v5e has no bf16 VPU/EUP path).
    y = jnp.dot(h.astype(cdt), w2_ref[...],
                preferred_element_type=jnp.float32, precision=precision)
    y = y + b2_ref[...]
    o_cols = o_ref.shape[1]
    if o_cols != y.shape[1]:
        y = y[:, :o_cols]          # narrow-output path: store only the real columns
    o_ref[...] = jax.nn.sigmoid(y).astype(o_ref.dtype)


# ---------------------------------------------------------------------------
# One-time parameter preparation (hoisted out of the forward pass)
# ---------------------------------------------------------------------------
def prepare_params(emb_tables, w1_t, b1, w2_t, b2, compute_dtype=jnp.bfloat16):
    """Pad / fuse module parameters into kernel operands (done once, not per call).

    emb_tables: list of (num_categories_i, embedding_dim_i) tables
    w1_t: (F, H) fc1 weight (transposed vs torch), b1: (H,)
    w2_t: (H, O) fc2 weight (transposed vs torch), b2: (O,)
    compute_dtype: MXU input dtype for EW1/W2 (bf16 default; f32 for exact parity).
    """
    cats = [int(t.shape[0]) for t in emb_tables]
    dims = [int(t.shape[1]) for t in emb_tables]
    C, F = sum(cats), sum(dims)
    H, O = int(w1_t.shape[1]), int(w2_t.shape[1])
    Cp, Fp, Hp, Op = (_round_up(d, 128) for d in (C, F, H, O))
    num_vars = len(emb_tables)

    # Block-diagonal stacked embedding table (row offset_i + c holds table_i[c]).
    e = jnp.zeros((Cp, Fp), jnp.float32)
    cat_offsets, roff, coff = [], 0, 0
    for t in emb_tables:
        c, d = int(t.shape[0]), int(t.shape[1])
        cat_offsets.append(roff)
        e = e.at[roff:roff + c, coff:coff + d].set(t.astype(jnp.float32))
        roff += c
        coff += d

    w1p = jnp.zeros((Fp, Hp), jnp.float32).at[:F, :H].set(w1_t.astype(jnp.float32))

    # Offline fusion: EW1 = E @ W1 (exact f32), then fold b1: each batch row selects
    # exactly num_vars real rows, so adding b1/num_vars to rows [:C] absorbs the bias.
    ew1 = jnp.dot(e, w1p, preferred_element_type=jnp.float32,
                  precision=jax.lax.Precision.HIGHEST)
    b1_row = jnp.zeros((Hp,), jnp.float32).at[:H].set(b1.astype(jnp.float32))
    ew1 = ew1.at[:C, :].add(b1_row[None, :] / num_vars)     # f32, before the cast

    w2p = jnp.zeros((Hp, Op), jnp.float32).at[:H, :O].set(w2_t.astype(jnp.float32))
    b2p = jnp.zeros((1, Op), jnp.float32).at[0, :O].set(b2.astype(jnp.float32))

    return dict(
        ew1=ew1.astype(compute_dtype),
        w2=w2p.astype(compute_dtype),
        b2=b2p,                                   # b2 stays f32 (f32 epilogue)
        cat_offsets=tuple(cat_offsets),
        c_pad=Cp, h_pad=Hp, o_pad=Op, output_dim=O,
        compute_dtype=jnp.dtype(compute_dtype),
    )


# ---------------------------------------------------------------------------
# Forward pass
# ---------------------------------------------------------------------------
def categorical_nn_forward(x_idx, params, block_b=4096, pad_output=False):
    """Forward matching CategoricalNN.forward; x_idx: (B, num_vars) int indices."""
    B, num_vars = int(x_idx.shape[0]), int(x_idx.shape[1])
    Cp, Hp, Op, O = params["c_pad"], params["h_pad"], params["o_pad"], params["output_dim"]
    cdt = params["compute_dtype"]
    ew1, w2, b2 = params["ew1"], params["w2"], params["b2"]

    # Batch tile: multiple of 8 sublanes, capped at block_b.  If the whole batch would
    # fit in one tile (and B >= 16), halve it so v7x's 2 TensorCores both get work.
    tb = min(block_b, _round_up(B, 8))
    tb = max(8, tb - tb % 8)
    if B >= 16 and _round_up(B, tb) // tb < 2:
        tb = _round_up((B + 1) // 2, 8)
    B_pad = _round_up(B, tb)

    x = x_idx.astype(jnp.int32)
    if B_pad != B:
        x = jnp.pad(x, ((0, B_pad - B), (0, 0)))   # pad rows behave like index-0; sliced off
    # Pre-add per-variable category offsets so the kernel compares without an offset add.
    x = x + jnp.asarray(params["cat_offsets"], jnp.int32)[None, :]

    out_cols = Op if pad_output else O
    itemsize = jnp.dtype(cdt).itemsize
    cost = pl.CostEstimate(
        flops=2 * B_pad * (Cp * Hp + Hp * Op),
        transcendentals=B_pad * out_cols,
        bytes_accessed=(x.size * 4
                        + (ew1.size + w2.size) * itemsize
                        + b2.size * 4
                        + B_pad * out_cols * 4),
    )

    precision = (jax.lax.Precision.HIGHEST if cdt == jnp.dtype(jnp.float32)
                 else jax.lax.Precision.DEFAULT)
    kernel = functools.partial(_mlp_kernel, c_pad=Cp, precision=precision)

    out = pl.pallas_call(
        kernel,
        out_shape=jax.ShapeDtypeStruct((B_pad, out_cols), jnp.float32),
        grid=(B_pad // tb,),
        in_specs=[
            pl.BlockSpec((tb, num_vars), lambda i: (i, 0)),   # x tile (pipelined)
            pl.BlockSpec((Cp, Hp), lambda i: (0, 0)),          # EW1 (VMEM-resident)
            pl.BlockSpec((Hp, Op), lambda i: (0, 0)),          # W2 (VMEM-resident)
            pl.BlockSpec((1, Op), lambda i: (0, 0)),           # b2 (VMEM-resident)
        ],
        out_specs=pl.BlockSpec((tb, out_cols), lambda i: (i, 0)),
        compiler_params=pltpu.CompilerParams(
            dimension_semantics=("parallel",),                 # 2 TCs on v7x
            vmem_limit_bytes=40 * 1024 * 1024,                 # ~17 MiB used at tb=4096
        ),
        cost_estimate=cost,
    )(x, ew1, w2, b2)

    return out[:B, :O]


# ---------------------------------------------------------------------------
# Pure-JAX reference (module semantics)
# ---------------------------------------------------------------------------
def _reference_forward(x_idx, emb_tables, w1_t, b1, w2_t, b2):
    embedded = [jnp.take(tbl, x_idx[:, i], axis=0) for i, tbl in enumerate(emb_tables)]
    feats = jnp.concatenate(embedded, axis=1).astype(jnp.float32)
    h = jnp.maximum(jnp.dot(feats, w1_t, precision=jax.lax.Precision.HIGHEST) + b1, 0.0)
    return jax.nn.sigmoid(jnp.dot(h, w2_t, precision=jax.lax.Precision.HIGHEST) + b2)


if __name__ == "__main__":
    key = jax.random.PRNGKey(0)

    # Module configuration (small, consistent with __init__ signature).
    num_categories_list = [5, 7, 4]
    embedding_dim_list = [8, 8, 16]
    hidden_dim = 32
    output_dim = 8
    batch = 8
    total_embedding_dim = sum(embedding_dim_list)

    keys = jax.random.split(key, 2 * len(num_categories_list) + 5)
    k_iter = iter(keys)

    emb_tables = [
        jax.random.normal(next(k_iter), (nc, ed), dtype=jnp.float32)
        for nc, ed in zip(num_categories_list, embedding_dim_list)
    ]
    w1_t = jax.random.normal(next(k_iter), (total_embedding_dim, hidden_dim),
                             dtype=jnp.float32) * (1.0 / jnp.sqrt(total_embedding_dim))
    b1 = jax.random.normal(next(k_iter), (hidden_dim,), dtype=jnp.float32) * 0.01
    w2_t = jax.random.normal(next(k_iter), (hidden_dim, output_dim),
                             dtype=jnp.float32) * (1.0 / jnp.sqrt(hidden_dim))
    b2 = jax.random.normal(next(k_iter), (output_dim,), dtype=jnp.float32) * 0.01

    cols = [
        jax.random.randint(next(k_iter), (batch, 1), 0, nc, dtype=jnp.int32)
        for nc in num_categories_list
    ]
    x_idx = jnp.concatenate(cols, axis=1)           # (B, num_vars)

    # --- f32 path (exact module numerics; narrow-output store) -------------
    params_f32 = prepare_params(emb_tables, w1_t, b1, w2_t, b2,
                                compute_dtype=jnp.float32)
    out = jax.block_until_ready(categorical_nn_forward(x_idx, params_f32))
    ref = _reference_forward(x_idx, emb_tables, w1_t, b1, w2_t, b2)
    assert out.shape == (batch, output_dim)
    assert jnp.allclose(out, ref, atol=1e-5, rtol=1e-5), "f32 mismatch vs reference"

    # --- padded lane-dense output path (benchmark alternative) -------------
    out_pad = jax.block_until_ready(
        categorical_nn_forward(x_idx, params_f32, pad_output=True))
    assert out_pad.shape == (batch, output_dim)
    assert jnp.allclose(out_pad, ref, atol=1e-5, rtol=1e-5), "padded-out mismatch"

    # --- multi-tile grid + ragged batch (exercises padding + pipeline) -----
    batch2 = 50
    k2 = jax.random.split(jax.random.PRNGKey(1), len(num_categories_list))
    x_idx2 = jnp.concatenate(
        [jax.random.randint(k2[i], (batch2, 1), 0, nc, dtype=jnp.int32)
         for i, nc in enumerate(num_categories_list)], axis=1)
    ref2 = _reference_forward(x_idx2, emb_tables, w1_t, b1, w2_t, b2)

    out2 = jax.block_until_ready(categorical_nn_forward(x_idx2, params_f32, block_b=16))
    assert out2.shape == (batch2, output_dim)
    assert jnp.allclose(out2, ref2, atol=1e-5, rtol=1e-5), "tiled f32 mismatch"

    # default block_b triggers the >=2-grid-step split (v7x dual-TC path)
    out2b = jax.block_until_ready(categorical_nn_forward(x_idx2, params_f32))
    assert jnp.allclose(out2b, ref2, atol=1e-5, rtol=1e-5), "split-tile f32 mismatch"

    # --- bf16 weight path (default; f32 accumulation, f32 epilogue) --------
    params_bf16 = prepare_params(emb_tables, w1_t, b1, w2_t, b2)   # bf16 default
    out3 = jax.block_until_ready(categorical_nn_forward(x_idx, params_bf16))
    assert out3.shape == (batch, output_dim)
    assert jnp.allclose(out3, ref, atol=2e-2, rtol=2e-2), "bf16 mismatch vs reference"

    print("KERNEL_OK")
</pallas_src>

<mosaic_0001>
module attributes {stable_mosaic.version = 11 : i64} {
  func.func @_mlp_kernel(%arg0: i32, %arg1: memref<8x3xi32, #tpu.memory_space<vmem>>, %arg2: memref<128x128xf32, #tpu.memory_space<vmem>>, %arg3: memref<128x128xf32, #tpu.memory_space<vmem>>, %arg4: memref<1x128xf32, #tpu.memory_space<vmem>>, %arg5: memref<8x8xf32, #tpu.memory_space<vmem>>) attributes {dimension_semantics = [#tpu.dimension_semantics<parallel>], iteration_bounds = array<i64: 1>, scalar_prefetch = 0 : i64, scratch_operands = 0 : i64, tpu.core_type = #tpu.core_type<tc>, window_params = [{transform_indices = @transform_0, window_bounds = array<i64: 8, 3>}, {pipeline_mode = #tpu.pipeline_mode<synchronous>, transform_indices = @transform_1, window_bounds = array<i64: 128, 128>}, {pipeline_mode = #tpu.pipeline_mode<synchronous>, transform_indices = @transform_2, window_bounds = array<i64: 128, 128>}, {pipeline_mode = #tpu.pipeline_mode<synchronous>, transform_indices = @transform_3, window_bounds = array<i64: 1, 128>}, {transform_indices = @transform_4, window_bounds = array<i64: 8, 8>}]} {
    %0 = tpu.iota {dimensions = array<i32: 1>} : vector<8x128xi32>
    %c0 = arith.constant 0 : index
    %c0_0 = arith.constant 0 : index
    %1 = vector.load %arg1[%c0, %c0_0] : memref<8x3xi32, #tpu.memory_space<vmem>>, vector<8x1xi32>
    %2 = vector.broadcast %1 : vector<8x1xi32> to vector<8x128xi32>
    %3 = arith.cmpi eq, %0, %2 : vector<8x128xi32>
    %c0_1 = arith.constant 0 : index
    %c1 = arith.constant 1 : index
    %4 = vector.load %arg1[%c0_1, %c1] : memref<8x3xi32, #tpu.memory_space<vmem>>, vector<8x1xi32>
    %5 = vector.broadcast %4 : vector<8x1xi32> to vector<8x128xi32>
    %6 = arith.cmpi eq, %0, %5 : vector<8x128xi32>
    %7 = arith.ori %3, %6 : vector<8x128xi1>
    %c0_2 = arith.constant 0 : index
    %c2 = arith.constant 2 : index
    %8 = vector.load %arg1[%c0_2, %c2] : memref<8x3xi32, #tpu.memory_space<vmem>>, vector<8x1xi32>
    %9 = vector.broadcast %8 : vector<8x1xi32> to vector<8x128xi32>
    %10 = arith.cmpi eq, %0, %9 : vector<8x128xi32>
    %11 = arith.ori %7, %10 : vector<8x128xi1>
    %12 = arith.extui %11 : vector<8x128xi1> to vector<8x128xi32>
    %13 = arith.sitofp %12 : vector<8x128xi32> to vector<8x128xf32>
    %c0_3 = arith.constant 0 : index
    %c0_4 = arith.constant 0 : index
    %14 = vector.load %arg2[%c0_3, %c0_4] : memref<128x128xf32, #tpu.memory_space<vmem>>, vector<128x128xf32>
    %cst = arith.constant dense<0.000000e+00> : vector<8x128xf32>
    %15 = tpu.matmul %13, %14, %cst {dimension_numbers = #tpu.dot_dimension_numbers<[1], [0], [0], [1], [0, 0, 1, 1], [], []>, precision = #tpu.contract_precision<fp32>} : vector<8x128xf32>, vector<128x128xf32>, vector<8x128xf32> -> vector<8x128xf32>
    %cst_5 = arith.constant 0.000000e+00 : f32
    %16 = vector.broadcast %cst_5 : f32 to vector<8x128xf32>
    %17 = arith.maximumf %15, %16 : vector<8x128xf32>
    %c0_6 = arith.constant 0 : index
    %c0_7 = arith.constant 0 : index
    %18 = vector.load %arg3[%c0_6, %c0_7] : memref<128x128xf32, #tpu.memory_space<vmem>>, vector<128x128xf32>
    %cst_8 = arith.constant dense<0.000000e+00> : vector<8x128xf32>
    %19 = tpu.matmul %17, %18, %cst_8 {dimension_numbers = #tpu.dot_dimension_numbers<[1], [0], [0], [1], [0, 0, 1, 1], [], []>, precision = #tpu.contract_precision<fp32>} : vector<8x128xf32>, vector<128x128xf32>, vector<8x128xf32> -> vector<8x128xf32>
    %c0_9 = arith.constant 0 : index
    %c0_10 = arith.constant 0 : index
    %20 = vector.load %arg4[%c0_9, %c0_10] : memref<1x128xf32, #tpu.memory_space<vmem>>, vector<1x128xf32>
    %21 = vector.broadcast %20 : vector<1x128xf32> to vector<8x128xf32>
    %22 = arith.addf %19, %21 : vector<8x128xf32>
    %23 = vector.extract_strided_slice %22 {offsets = [0, 0], sizes = [8, 8], strides = [1, 1]} : vector<8x128xf32> to vector<8x8xf32>
    %24 = arith.negf %23 : vector<8x8xf32>
    %25 = math.exp %24 : vector<8x8xf32>
    %cst_11 = arith.constant 1.000000e+00 : f32
    %26 = vector.broadcast %cst_11 : f32 to vector<8x8xf32>
    %27 = arith.addf %26, %25 : vector<8x8xf32>
    %28 = arith.divf %26, %27 : vector<8x8xf32>
    %c0_12 = arith.constant 0 : index
    %c0_13 = arith.constant 0 : index
    %29 = vector.load %arg5[%c0_12, %c0_13] : memref<8x8xf32, #tpu.memory_space<vmem>>, vector<8x8xf32>
    tpu.vector_store %arg5[%c0_12, %c0_13], %28 {strides = array<i32>} : memref<8x8xf32, #tpu.memory_space<vmem>>, vector<8x8xf32>,
    return
  }
  func.func @transform_0(%arg0: i32) -> (i32, i32) {
    %c0_i32 = arith.constant 0 : i32
    %c0_i32_0 = arith.constant 0 : i32
    return %arg0, %c0_i32 : i32, i32
  }
  func.func @transform_1(%arg0: i32) -> (i32, i32) {
    %c0_i32 = arith.constant 0 : i32
    %c0_i32_0 = arith.constant 0 : i32
    %c0_i32_1 = arith.constant 0 : i32
    return %c0_i32, %c0_i32_0 : i32, i32
  }
  func.func @transform_2(%arg0: i32) -> (i32, i32) {
    %c0_i32 = arith.constant 0 : i32
    %c0_i32_0 = arith.constant 0 : i32
    %c0_i32_1 = arith.constant 0 : i32
    return %c0_i32, %c0_i32_0 : i32, i32
  }
  func.func @transform_3(%arg0: i32) -> (i32, i32) {
    %c0_i32 = arith.constant 0 : i32
    %c0_i32_0 = arith.constant 0 : i32
    %c0_i32_1 = arith.constant 0 : i32
    return %c0_i32, %c0_i32_0 : i32, i32
  }
  func.func @transform_4(%arg0: i32) -> (i32, i32) {
    %c0_i32 = arith.constant 0 : i32
    %c0_i32_0 = arith.constant 0 : i32
    return %arg0, %c0_i32 : i32, i32
  }
}

</mosaic_0001>

<llo_original>
// kernel: tpu_custom_call.1
$region0: #{tpu_custom_call.1}
  #allocation0 [shape = 'u32[]', space=smem, size = 0x4, offset = 0x4, fixed_abs, tag = 'smem constant byte address 0x4 - core index']
  #allocation1 [shape = 'u32[144,128]{1,0:T(1,128)}', space=vmem, size = 0x12000, scoped, tag = 'internal scratch']
  %s0 = inlined_call_operand.vmem [shape: s32[8,3], index: 0, kind: input, shape index: {}]
  %s1 = inlined_call_operand.hbm [shape: f32[128,128], index: 1, kind: input, shape index: {}]
  %s2 = inlined_call_operand.hbm [shape: f32[128,128], index: 2, kind: input, shape index: {}]
  %s3 = inlined_call_operand.vmem [shape: f32[1,128], index: 3, kind: input, shape index: {}]
  %s4 = inlined_call_operand.hbm [shape: f32[8,8], index: 4, kind: output, shape index: {}]
  %s5 = sld [smem:[#allocation0]]
  $region34: #{tpu_custom_call.1} parent=0
    _
  %s7 = ssub.s32 1, %s5
  %s8 = scalar_select 0, %s7, %s5
  $region1: #{tpu_custom_call.1} parent=0
    #allocation2 [shape = 'u8[65536]{0}', space=vmem, size = 0x10000, scoped, tag = 'input window, operand 1, single buffered']
    #allocation3 [shape = 's32[1]{0}', space=sflag, size = 0x4, scoped, tag = 'scoped memory for tpu_custom_call.1']
    #allocation4 [shape = 's32[1]{0}', space=sflag, size = 0x4, scoped, tag = 'scoped memory for tpu_custom_call.1']
    #allocation5 [shape = 'u8[65536]{0}', space=vmem, size = 0x10000, scoped, tag = 'input window, operand 2, single buffered']
    #allocation6 [shape = 's32[1]{0}', space=sflag, size = 0x4, scoped, tag = 'scoped memory for tpu_custom_call.1']
    #allocation7 [shape = 'u8[4096]{0}', space=vmem, size = 0x1000, scoped, tag = 'output window, operand 0, single buffered']
    %9 = vsyncpa [#allocation3], 0
    %10 = vsyncpa [#allocation6], 0
    %11 = vsyncpa [#allocation4], 0
    // Predicated region
    $region2: #{tpu_custom_call.1} parent=1 // pred_check
      _
    $region3: #{tpu_custom_call.1} parent=1 // pred_check_branch
      %13 = sbr.rel (0) target = $region5
    $region4: #{tpu_custom_call.1} parent=1 // pred_region
      _
    $region5: #{tpu_custom_call.1} parent=1 // pred_fallthru
      _
    // Predicated region
    $region6: #{tpu_custom_call.1} parent=1 // pred_check
      _
    $region7: #{tpu_custom_call.1} parent=1 // pred_check_branch
      %15 = sbr.rel (0) target = $region9
    $region8: #{tpu_custom_call.1} parent=1 // pred_region
      %s17 = ssub.s32 2048, 2048
      %18 = vsyncadd [#allocation3], %s17
      %s19 = sshll.u32 [#allocation2], 4
      %s20 = int_to_ptr.vmem [resolvable:$true] %s19
      %25 = dma.hbm_to_vmem [thread:$0]  %s1, 2048, %s20, [#allocation3], 128, 128, 8
    $region9: #{tpu_custom_call.1} parent=1 // pred_fallthru
      _
    // Predicated region
    $region10: #{tpu_custom_call.1} parent=1 // pred_check
      _
    $region11: #{tpu_custom_call.1} parent=1 // pred_check_branch
      %27 = sbr.rel (0) target = $region13
    $region12: #{tpu_custom_call.1} parent=1 // pred_region
      %s29 = ssub.s32 2048, 2048
      %30 = vsyncadd [#allocation6], %s29
      %s31 = sshll.u32 [#allocation5], 4
      %s32 = int_to_ptr.vmem [resolvable:$true] %s31
      %37 = dma.hbm_to_vmem [thread:$0]  %s2, 2048, %s32, [#allocation6], 128, 128, 8
    $region13: #{tpu_custom_call.1} parent=1 // pred_fallthru
      _
    // Predicated region
    $region14: #{tpu_custom_call.1} parent=1 // pred_check
      _
    $region15: #{tpu_custom_call.1} parent=1 // pred_check_branch
      %39 = sbr.rel (0) target = $region17
    $region16: #{tpu_custom_call.1} parent=1 // pred_region
      _
    $region17: #{tpu_custom_call.1} parent=1 // pred_fallthru
      _
    // Predicated region
    $region18: #{tpu_custom_call.1} parent=1 // pred_check
      _
    $region19: #{tpu_custom_call.1} parent=1 // pred_check_branch
      %41 = sbr.rel (0) target = $region21
    $region20: #{tpu_custom_call.1} parent=1 // pred_region
      %42 = dma.done [#allocation3], 2048
    $region21: #{tpu_custom_call.1} parent=1 // pred_fallthru
      _
    // Predicated region
    $region22: #{tpu_custom_call.1} parent=1 // pred_check
      _
    $region23: #{tpu_custom_call.1} parent=1 // pred_check_branch
      %44 = sbr.rel (0) target = $region25
    $region24: #{tpu_custom_call.1} parent=1 // pred_region
      %45 = dma.done [#allocation6], 2048
    $region25: #{tpu_custom_call.1} parent=1 // pred_fallthru
      _
    %v46 = vlaneseq
    %v47 = vand.u32 %v46, 127
    %v48 = vld [vmem:[%s0] sm:$0xff]
    %49 = vset.pattern.permute.xlu0 0
    %50 = vperm.xlu0 %49, %v48
    %v51 = vpop.permute.xlu0 %50
    %vm52 = vcmp.eq.s32.totalorder %v47, %v51
    %53 = vset.pattern.permute.xlu0 1
    %54 = vperm.xlu0 %53, %v48
    %v55 = vpop.permute.xlu0 %54
    %vm56 = vcmp.eq.s32.totalorder %v47, %v55
    %vm57 = vmor %vm52, %vm56
    %58 = vset.pattern.permute.xlu0 2
    %59 = vperm.xlu0 %58, %v48
    %v60 = vpop.permute.xlu0 %59
    %vm61 = vcmp.eq.s32.totalorder %v47, %v60
    %vm62 = vmor %vm57, %vm61
    %v63 = vsel %vm62, 1, 0
    %v64 = vcvt.s32.f32 %v63
    %v65 = vld [vmem:[#allocation2] sm:$0xff]
    %v66 = vld [vmem:[#allocation2 + $0x8] sm:$0xff]
    %v67 = vld [vmem:[#allocation2 + $0x10] sm:$0xff]
    %v68 = vld [vmem:[#allocation2 + $0x18] sm:$0xff]
    %v69 = vld [vmem:[#allocation2 + $0x20] sm:$0xff]
    %v70 = vld [vmem:[#allocation2 + $0x28] sm:$0xff]
    %v71 = vld [vmem:[#allocation2 + $0x30] sm:$0xff]
    %v72 = vld [vmem:[#allocation2 + $0x38] sm:$0xff]
    %v73 = vld [vmem:[#allocation2 + $0x40] sm:$0xff]
    %v74 = vld [vmem:[#allocation2 + $0x48] sm:$0xff]
    %v75 = vld [vmem:[#allocation2 + $0x50] sm:$0xff]
    %v76 = vld [vmem:[#allocation2 + $0x58] sm:$0xff]
    %v77 = vld [vmem:[#allocation2 + $0x60] sm:$0xff]
    %v78 = vld [vmem:[#allocation2 + $0x68] sm:$0xff]
    %v79 = vld [vmem:[#allocation2 + $0x70] sm:$0xff]
    %v80 = vld [vmem:[#allocation2 + $0x78] sm:$0xff]
    %81 = vmatprep.subr.mxu0 0.0
    %v82 = vand.u32 %v65, 4294901760
    %83 = vmatpush1.msra.mxu0 %v82
    %84 = vmatprep.subr.mxu0 0.0
    %v85 = vand.u32 %v66, 4294901760
    %86 = vmatpush1.msra.mxu0 %v85
    %87 = vmatprep.subr.mxu0 0.0
    %v88 = vand.u32 %v67, 4294901760
    %89 = vmatpush1.msra.mxu0 %v88
    %90 = vmatprep.subr.mxu0 0.0
    %v91 = vand.u32 %v68, 4294901760
    %92 = vmatpush1.msra.mxu0 %v91
    %93 = vmatprep.subr.mxu0 0.0
    %v94 = vand.u32 %v69, 4294901760
    %95 = vmatpush1.msra.mxu0 %v94
    %96 = vmatprep.subr.mxu0 0.0
    %v97 = vand.u32 %v70, 4294901760
    %98 = vmatpush1.msra.mxu0 %v97
    %99 = vmatprep.subr.mxu0 0.0
    %v100 = vand.u32 %v71, 4294901760
    %101 = vmatpush1.msra.mxu0 %v100
    %102 = vmatprep.subr.mxu0 0.0
    %v103 = vand.u32 %v72, 4294901760
    %104 = vmatpush1.msra.mxu0 %v103
    %105 = vmatprep.subr.mxu0 0.0
    %v106 = vand.u32 %v73, 4294901760
    %107 = vmatpush1.msra.mxu0 %v106
    %108 = vmatprep.subr.mxu0 0.0
    %v109 = vand.u32 %v74, 4294901760
    %110 = vmatpush1.msra.mxu0 %v109
    %111 = vmatprep.subr.mxu0 0.0
    %v112 = vand.u32 %v75, 4294901760
    %113 = vmatpush1.msra.mxu0 %v112
    %114 = vmatprep.subr.mxu0 0.0
    %v115 = vand.u32 %v76, 4294901760
    %116 = vmatpush1.msra.mxu0 %v115
    %117 = vmatprep.subr.mxu0 0.0
    %v118 = vand.u32 %v77, 4294901760
    %119 = vmatpush1.msra.mxu0 %v118
    %120 = vmatprep.subr.mxu0 0.0
    %v121 = vand.u32 %v78, 4294901760
    %122 = vmatpush1.msra.mxu0 %v121
    %123 = vmatprep.subr.mxu0 0.0
    %v124 = vand.u32 %v79, 4294901760
    %125 = vmatpush1.msra.mxu0 %v124
    %126 = vmatprep.subr.mxu0 0.0
    %v127 = vand.u32 %v80, 4294901760
    %128 = vmatpush1.msra.mxu0 %v127
    %129 = vmatprep.subr.mxu0 0.0
    %130 = vmatpush1.msra.mxu0 0.0
    %131 = vmatprep.subr.mxu0 0.0
    %132 = vmatpush1.msra.mxu0 0.0
    %133 = vmatprep.subr.mxu0 0.0
    %134 = vmatpush1.msra.mxu0 0.0
    %135 = vmatprep.subr.mxu0 0.0
    %136 = vmatpush1.msra.mxu0 0.0
    %137 = vmatprep.subr.mxu0 0.0
    %138 = vmatpush1.msra.mxu0 0.0
    %139 = vmatprep.subr.mxu0 0.0
    %140 = vmatpush1.msra.mxu0 0.0
    %141 = vmatprep.subr.mxu0 0.0
    %142 = vmatpush1.msra.mxu0 0.0
    %143 = vmatprep.subr.mxu0 0.0
    %144 = vmatpush1.msra.mxu0 0.0
    %145 = vmatprep.subr.mxu0 0.0
    %146 = vmatpush1.msra.mxu0 0.0
    %147 = vmatprep.subr.mxu0 0.0
    %148 = vmatpush1.msra.mxu0 0.0
    %149 = vmatprep.subr.mxu0 0.0
    %150 = vmatpush1.msra.mxu0 0.0
    %151 = vmatprep.subr.mxu0 0.0
    %152 = vmatpush1.msra.mxu0 0.0
    %153 = vmatprep.subr.mxu0 0.0
    %154 = vmatpush1.msra.mxu0 0.0
    %155 = vmatprep.subr.mxu0 0.0
    %156 = vmatpush1.msra.mxu0 0.0
    %157 = vmatprep.subr.mxu0 0.0
    %158 = vmatpush1.msra.mxu0 0.0
    %159 = vmatprep.subr.mxu0 0.0
    %160 = vmatpush1.msra.mxu0 0.0
    %161 = vmatprep.mubr.f32.mxu0 0.0
    %v162 = vand.u32 %v64, 4294901760
    %v163 = vsub.f32 %v64, %v162
    %v164 = vand.u32 %v163, 4294901760
    %v165 = vsub.f32 %v163, %v164
    %v166 = vand.u32 %v165, 4294901760
    %167 = vmatmul.mubr.f32.gmra.mrb[0].mxu0 %v166
    %v168 = vpop.f32.mrb[0].mxu0
    %v169 = vadd.f32 0.0, %v168
    %v170 = vpop.f32.mrb[0].mxu0
    %171 = vdwg.mxu0
    %172 = vmatprep.subr.mxu0 0.0
    %v173 = vand.u32 %v65, 4294901760
    %v174 = vsub.f32 %v65, %v173
    %v175 = vand.u32 %v174, 4294901760
    %v176 = vsub.f32 %v174, %v175
    %v177 = vand.u32 %v176, 4294901760
    %178 = vmatpush1.msra.mxu0 %v177
    %179 = vmatprep.subr.mxu0 0.0
    %v180 = vand.u32 %v66, 4294901760
    %v181 = vsub.f32 %v66, %v180
    %v182 = vand.u32 %v181, 4294901760
    %v183 = vsub.f32 %v181, %v182
    %v184 = vand.u32 %v183, 4294901760
    %185 = vmatpush1.msra.mxu0 %v184
    %186 = vmatprep.subr.mxu0 0.0
    %v187 = vand.u32 %v67, 4294901760
    %v188 = vsub.f32 %v67, %v187
    %v189 = vand.u32 %v188, 4294901760
    %v190 = vsub.f32 %v188, %v189
    %v191 = vand.u32 %v190, 4294901760
    %192 = vmatpush1.msra.mxu0 %v191
    %193 = vmatprep.subr.mxu0 0.0
    %v194 = vand.u32 %v68, 4294901760
    %v195 = vsub.f32 %v68, %v194
    %v196 = vand.u32 %v195, 4294901760
    %v197 = vsub.f32 %v195, %v196
    %v198 = vand.u32 %v197, 4294901760
    %199 = vmatpush1.msra.mxu0 %v198
    %200 = vmatprep.subr.mxu0 0.0
    %v201 = vand.u32 %v69, 4294901760
    %v202 = vsub.f32 %v69, %v201
    %v203 = vand.u32 %v202, 4294901760
    %v204 = vsub.f32 %v202, %v203
    %v205 = vand.u32 %v204, 4294901760
    %206 = vmatpush1.msra.mxu0 %v205
    %207 = vmatprep.subr.mxu0 0.0
    %v208 = vand.u32 %v70, 4294901760
    %v209 = vsub.f32 %v70, %v208
    %v210 = vand.u32 %v209, 4294901760
    %v211 = vsub.f32 %v209, %v210
    %v212 = vand.u32 %v211, 4294901760
    %213 = vmatpush1.msra.mxu0 %v212
    %214 = vmatprep.subr.mxu0 0.0
    %v215 = vand.u32 %v71, 4294901760
    %v216 = vsub.f32 %v71, %v215
    %v217 = vand.u32 %v216, 4294901760
    %v218 = vsub.f32 %v216, %v217
    %v219 = vand.u32 %v218, 4294901760
    %220 = vmatpush1.msra.mxu0 %v219
    %221 = vmatprep.subr.mxu0 0.0
    %v222 = vand.u32 %v72, 4294901760
    %v223 = vsub.f32 %v72, %v222
    %v224 = vand.u32 %v223, 4294901760
    %v225 = vsub.f32 %v223, %v224
    %v226 = vand.u32 %v225, 4294901760
    %227 = vmatpush1.msra.mxu0 %v226
    %228 = vmatprep.subr.mxu0 0.0
    %v229 = vand.u32 %v73, 4294901760
    %v230 = vsub.f32 %v73, %v229
    %v231 = vand.u32 %v230, 4294901760
    %v232 = vsub.f32 %v230, %v231
    %v233 = vand.u32 %v232, 4294901760
    %234 = vmatpush1.msra.mxu0 %v233
    %235 = vmatprep.subr.mxu0 0.0
    %v236 = vand.u32 %v74, 4294901760
    %v237 = vsub.f32 %v74, %v236
    %v238 = vand.u32 %v237, 4294901760
    %v239 = vsub.f32 %v237, %v238
    %v240 = vand.u32 %v239, 4294901760
    %241 = vmatpush1.msra.mxu0 %v240
    %242 = vmatprep.subr.mxu0 0.0
    %v243 = vand.u32 %v75, 4294901760
    %v244 = vsub.f32 %v75, %v243
    %v245 = vand.u32 %v244, 4294901760
    %v246 = vsub.f32 %v244, %v245
    %v247 = vand.u32 %v246, 4294901760
    %248 = vmatpush1.msra.mxu0 %v247
    %249 = vmatprep.subr.mxu0 0.0
    %v250 = vand.u32 %v76, 4294901760
    %v251 = vsub.f32 %v76, %v250
    %v252 = vand.u32 %v251, 4294901760
    %v253 = vsub.f32 %v251, %v252
    %v254 = vand.u32 %v253, 4294901760
    %255 = vmatpush1.msra.mxu0 %v254
    %256 = vmatprep.subr.mxu0 0.0
    %v257 = vand.u32 %v77, 4294901760
    %v258 = vsub.f32 %v77, %v257
    %v259 = vand.u32 %v258, 4294901760
    %v260 = vsub.f32 %v258, %v259
    %v261 = vand.u32 %v260, 4294901760
    %262 = vmatpush1.msra.mxu0 %v261
    %263 = vmatprep.subr.mxu0 0.0
    %v264 = vand.u32 %v78, 4294901760
    %v265 = vsub.f32 %v78, %v264
    %v266 = vand.u32 %v265, 4294901760
    %v267 = vsub.f32 %v265, %v266
    %v268 = vand.u32 %v267, 4294901760
    %269 = vmatpush1.msra.mxu0 %v268
    %270 = vmatprep.subr.mxu0 0.0
    %v271 = vand.u32 %v79, 4294901760
    %v272 = vsub.f32 %v79, %v271
    %v273 = vand.u32 %v272, 4294901760
    %v274 = vsub.f32 %v272, %v273
    %v275 = vand.u32 %v274, 4294901760
    %276 = vmatpush1.msra.mxu0 %v275
    %277 = vmatprep.subr.mxu0 0.0
    %v278 = vand.u32 %v80, 4294901760
    %v279 = vsub.f32 %v80, %v278
    %v280 = vand.u32 %v279, 4294901760
    %v281 = vsub.f32 %v279, %v280
    %v282 = vand.u32 %v281, 4294901760
    %283 = vmatpush1.msra.mxu0 %v282
    %284 = vmatprep.subr.mxu0 0.0
    %285 = vmatpush1.msra.mxu0 0.0
    %286 = vmatprep.subr.mxu0 0.0
    %287 = vmatpush1.msra.mxu0 0.0
    %288 = vmatprep.subr.mxu0 0.0
    %289 = vmatpush1.msra.mxu0 0.0
    %290 = vmatprep.subr.mxu0 0.0
    %291 = vmatpush1.msra.mxu0 0.0
    %292 = vmatprep.subr.mxu0 0.0
    %293 = vmatpush1.msra.mxu0 0.0
    %294 = vmatprep.subr.mxu0 0.0
    %295 = vmatpush1.msra.mxu0 0.0
    %296 = vmatprep.subr.mxu0 0.0
    %297 = vmatpush1.msra.mxu0 0.0
    %298 = vmatprep.subr.mxu0 0.0
    %299 = vmatpush1.msra.mxu0 0.0
    %300 = vmatprep.subr.mxu0 0.0
    %301 = vmatpush1.msra.mxu0 0.0
    %302 = vmatprep.subr.mxu0 0.0
    %303 = vmatpush1.msra.mxu0 0.0
    %304 = vmatprep.subr.mxu0 0.0
    %305 = vmatpush1.msra.mxu0 0.0
    %306 = vmatprep.subr.mxu0 0.0
    %307 = vmatpush1.msra.mxu0 0.0
    %308 = vmatprep.subr.mxu0 0.0
    %309 = vmatpush1.msra.mxu0 0.0
    %310 = vmatprep.subr.mxu0 0.0
    %311 = vmatpush1.msra.mxu0 0.0
    %312 = vmatprep.subr.mxu0 0.0
    %313 = vmatpush1.msra.mxu0 0.0
    %314 = vmatprep.subr.mxu0 0.0
    %315 = vmatpush1.msra.mxu0 0.0
    %316 = vmatprep.mubr.f32.mxu0 0.0
    %v317 = vand.u32 %v64, 4294901760
    %318 = vmatmul.mubr.f32.gmra.mrb[0].mxu0 %v317
    %v319 = vpop.f32.mrb[0].mxu0
    %v320 = vadd.f32 %v169, %v319
    %v321 = vpop.f32.mrb[0].mxu0
    %322 = vdwg.mxu0
    %323 = vmatprep.subr.mxu0 0.0
    %v324 = vand.u32 %v65, 4294901760
    %v325 = vsub.f32 %v65, %v324
    %326 = vmatpush1.msra.mxu0 %v325
    %327 = vmatprep.subr.mxu0 0.0
    %v328 = vand.u32 %v66, 4294901760
    %v329 = vsub.f32 %v66, %v328
    %330 = vmatpush1.msra.mxu0 %v329
    %331 = vmatprep.subr.mxu0 0.0
    %v332 = vand.u32 %v67, 4294901760
    %v333 = vsub.f32 %v67, %v332
    %334 = vmatpush1.msra.mxu0 %v333
    %335 = vmatprep.subr.mxu0 0.0
    %v336 = vand.u32 %v68, 4294901760
    %v337 = vsub.f32 %v68, %v336
    %338 = vmatpush1.msra.mxu0 %v337
    %339 = vmatprep.subr.mxu0 0.0
    %v340 = vand.u32 %v69, 4294901760
    %v341 = vsub.f32 %v69, %v340
    %342 = vmatpush1.msra.mxu0 %v341
    %343 = vmatprep.subr.mxu0 0.0
    %v344 = vand.u32 %v70, 4294901760
    %v345 = vsub.f32 %v70, %v344
    %346 = vmatpush1.msra.mxu0 %v345
    %347 = vmatprep.subr.mxu0 0.0
    %v348 = vand.u32 %v71, 4294901760
    %v349 = vsub.f32 %v71, %v348
    %350 = vmatpush1.msra.mxu0 %v349
    %351 = vmatprep.subr.mxu0 0.0
    %v352 = vand.u32 %v72, 4294901760
    %v353 = vsub.f32 %v72, %v352
    %354 = vmatpush1.msra.mxu0 %v353
    %355 = vmatprep.subr.mxu0 0.0
    %v356 = vand.u32 %v73, 4294901760
    %v357 = vsub.f32 %v73, %v356
    %358 = vmatpush1.msra.mxu0 %v357
    %359 = vmatprep.subr.mxu0 0.0
    %v360 = vand.u32 %v74, 4294901760
    %v361 = vsub.f32 %v74, %v360
    %362 = vmatpush1.msra.mxu0 %v361
    %363 = vmatprep.subr.mxu0 0.0
    %v364 = vand.u32 %v75, 4294901760
    %v365 = vsub.f32 %v75, %v364
    %366 = vmatpush1.msra.mxu0 %v365
    %367 = vmatprep.subr.mxu0 0.0
    %v368 = vand.u32 %v76, 4294901760
    %v369 = vsub.f32 %v76, %v368
    %370 = vmatpush1.msra.mxu0 %v369
    %371 = vmatprep.subr.mxu0 0.0
    %v372 = vand.u32 %v77, 4294901760
    %v373 = vsub.f32 %v77, %v372
    %374 = vmatpush1.msra.mxu0 %v373
    %375 = vmatprep.subr.mxu0 0.0
    %v376 = vand.u32 %v78, 4294901760
    %v377 = vsub.f32 %v78, %v376
    %378 = vmatpush1.msra.mxu0 %v377
    %379 = vmatprep.subr.mxu0 0.0
    %v380 = vand.u32 %v79, 4294901760
    %v381 = vsub.f32 %v79, %v380
    %382 = vmatpush1.msra.mxu0 %v381
    %383 = vmatprep.subr.mxu0 0.0
    %v384 = vand.u32 %v80, 4294901760
    %v385 = vsub.f32 %v80, %v384
    %386 = vmatpush1.msra.mxu0 %v385
    %387 = vmatprep.subr.mxu0 0.0
    %388 = vmatpush1.msra.mxu0 0.0
    %389 = vmatprep.subr.mxu0 0.0
    %390 = vmatpush1.msra.mxu0 0.0
    %391 = vmatprep.subr.mxu0 0.0
    %392 = vmatpush1.msra.mxu0 0.0
    %393 = vmatprep.subr.mxu0 0.0
    %394 = vmatpush1.msra.mxu0 0.0
    %395 = vmatprep.subr.mxu0 0.0
    %396 = vmatpush1.msra.mxu0 0.0
    %397 = vmatprep.subr.mxu0 0.0
    %398 = vmatpush1.msra.mxu0 0.0
    %399 = vmatprep.subr.mxu0 0.0
    %400 = vmatpush1.msra.mxu0 0.0
    %401 = vmatprep.subr.mxu0 0.0
    %402 = vmatpush1.msra.mxu0 0.0
    %403 = vmatprep.subr.mxu0 0.0
    %404 = vmatpush1.msra.mxu0 0.0
    %405 = vmatprep.subr.mxu0 0.0
    %406 = vmatpush1.msra.mxu0 0.0
    %407 = vmatprep.subr.mxu0 0.0
    %408 = vmatpush1.msra.mxu0 0.0
    %409 = vmatprep.subr.mxu0 0.0
    %410 = vmatpush1.msra.mxu0 0.0
    %411 = vmatprep.subr.mxu0 0.0
    %412 = vmatpush1.msra.mxu0 0.0
    %413 = vmatprep.subr.mxu0 0.0
    %414 = vmatpush1.msra.mxu0 0.0
    %415 = vmatprep.subr.mxu0 0.0
    %416 = vmatpush1.msra.mxu0 0.0
    %417 = vmatprep.subr.mxu0 0.0
    %418 = vmatpush1.msra.mxu0 0.0
    %419 = vmatprep.mubr.f32.mxu0 0.0
    %v420 = vand.u32 %v64, 4294901760
    %v421 = vsub.f32 %v64, %v420
    %422 = vmatmul.mubr.f32.gmra.mrb[0].mxu0 %v421
    %v423 = vpop.f32.mrb[0].mxu0
    %v424 = vadd.f32 %v320, %v423
    %v425 = vpop.f32.mrb[0].mxu0
    %426 = vdwg.mxu0
    %427 = vmatprep.subr.mxu0 0.0
    %v428 = vand.u32 %v65, 4294901760
    %429 = vmatpush1.msra.mxu0 %v428
    %430 = vmatprep.subr.mxu0 0.0
    %v431 = vand.u32 %v66, 4294901760
    %432 = vmatpush1.msra.mxu0 %v431
    %433 = vmatprep.subr.mxu0 0.0
    %v434 = vand.u32 %v67, 4294901760
    %435 = vmatpush1.msra.mxu0 %v434
    %436 = vmatprep.subr.mxu0 0.0
    %v437 = vand.u32 %v68, 4294901760
    %438 = vmatpush1.msra.mxu0 %v437
    %439 = vmatprep.subr.mxu0 0.0
    %v440 = vand.u32 %v69, 4294901760
    %441 = vmatpush1.msra.mxu0 %v440
    %442 = vmatprep.subr.mxu0 0.0
    %v443 = vand.u32 %v70, 4294901760
    %444 = vmatpush1.msra.mxu0 %v443
    %445 = vmatprep.subr.mxu0 0.0
    %v446 = vand.u32 %v71, 4294901760
    %447 = vmatpush1.msra.mxu0 %v446
    %448 = vmatprep.subr.mxu0 0.0
    %v449 = vand.u32 %v72, 4294901760
    %450 = vmatpush1.msra.mxu0 %v449
    %451 = vmatprep.subr.mxu0 0.0
    %v452 = vand.u32 %v73, 4294901760
    %453 = vmatpush1.msra.mxu0 %v452
    %454 = vmatprep.subr.mxu0 0.0
    %v455 = vand.u32 %v74, 4294901760
    %456 = vmatpush1.msra.mxu0 %v455
    %457 = vmatprep.subr.mxu0 0.0
    %v458 = vand.u32 %v75, 4294901760
    %459 = vmatpush1.msra.mxu0 %v458
    %460 = vmatprep.subr.mxu0 0.0
    %v461 = vand.u32 %v76, 4294901760
    %462 = vmatpush1.msra.mxu0 %v461
    %463 = vmatprep.subr.mxu0 0.0
    %v464 = vand.u32 %v77, 4294901760
    %465 = vmatpush1.msra.mxu0 %v464
    %466 = vmatprep.subr.mxu0 0.0
    %v467 = vand.u32 %v78, 4294901760
    %468 = vmatpush1.msra.mxu0 %v467
    %469 = vmatprep.subr.mxu0 0.0
    %v470 = vand.u32 %v79, 4294901760
    %471 = vmatpush1.msra.mxu0 %v470
    %472 = vmatprep.subr.mxu0 0.0
    %v473 = vand.u32 %v80, 4294901760
    %474 = vmatpush1.msra.mxu0 %v473
    %475 = vmatprep.subr.mxu0 0.0
    %476 = vmatpush1.msra.mxu0 0.0
    %477 = vmatprep.subr.mxu0 0.0
    %478 = vmatpush1.msra.mxu0 0.0
    %479 = vmatprep.subr.mxu0 0.0
    %480 = vmatpush1.msra.mxu0 0.0
    %481 = vmatprep.subr.mxu0 0.0
    %482 = vmatpush1.msra.mxu0 0.0
    %483 = vmatprep.subr.mxu0 0.0
    %484 = vmatpush1.msra.mxu0 0.0
    %485 = vmatprep.subr.mxu0 0.0
    %486 = vmatpush1.msra.mxu0 0.0
    %487 = vmatprep.subr.mxu0 0.0
    %488 = vmatpush1.msra.mxu0 0.0
    %489 = vmatprep.subr.mxu0 0.0
    %490 = vmatpush1.msra.mxu0 0.0
    %491 = vmatprep.subr.mxu0 0.0
    %492 = vmatpush1.msra.mxu0 0.0
    %493 = vmatprep.subr.mxu0 0.0
    %494 = vmatpush1.msra.mxu0 0.0
    %495 = vmatprep.subr.mxu0 0.0
    %496 = vmatpush1.msra.mxu0 0.0
    %497 = vmatprep.subr.mxu0 0.0
    %498 = vmatpush1.msra.mxu0 0.0
    %499 = vmatprep.subr.mxu0 0.0
    %500 = vmatpush1.msra.mxu0 0.0
    %501 = vmatprep.subr.mxu0 0.0
    %502 = vmatpush1.msra.mxu0 0.0
    %503 = vmatprep.subr.mxu0 0.0
    %504 = vmatpush1.msra.mxu0 0.0
    %505 = vmatprep.subr.mxu0 0.0
    %506 = vmatpush1.msra.mxu0 0.0
    %507 = vmatprep.mubr.f32.mxu0 0.0
    %v508 = vand.u32 %v64, 4294901760
    %v509 = vsub.f32 %v64, %v508
    %v510 = vand.u32 %v509, 4294901760
    %511 = vmatmul.mubr.f32.gmra.mrb[0].mxu0 %v510
    %v512 = vpop.f32.mrb[0].mxu0
    %v513 = vadd.f32 %v424, %v512
    %v514 = vpop.f32.mrb[0].mxu0
    %515 = vdwg.mxu0
    %516 = vmatprep.subr.mxu0 0.0
    %v517 = vand.u32 %v65, 4294901760
    %v518 = vsub.f32 %v65, %v517
    %v519 = vand.u32 %v518, 4294901760
    %520 = vmatpush1.msra.mxu0 %v519
    %521 = vmatprep.subr.mxu0 0.0
    %v522 = vand.u32 %v66, 4294901760
    %v523 = vsub.f32 %v66, %v522
    %v524 = vand.u32 %v523, 4294901760
    %525 = vmatpush1.msra.mxu0 %v524
    %526 = vmatprep.subr.mxu0 0.0
    %v527 = vand.u32 %v67, 4294901760
    %v528 = vsub.f32 %v67, %v527
    %v529 = vand.u32 %v528, 4294901760
    %530 = vmatpush1.msra.mxu0 %v529
    %531 = vmatprep.subr.mxu0 0.0
    %v532 = vand.u32 %v68, 4294901760
    %v533 = vsub.f32 %v68, %v532
    %v534 = vand.u32 %v533, 4294901760
    %535 = vmatpush1.msra.mxu0 %v534
    %536 = vmatprep.subr.mxu0 0.0
    %v537 = vand.u32 %v69, 4294901760
    %v538 = vsub.f32 %v69, %v537
    %v539 = vand.u32 %v538, 4294901760
    %540 = vmatpush1.msra.mxu0 %v539
    %541 = vmatprep.subr.mxu0 0.0
    %v542 = vand.u32 %v70, 4294901760
    %v543 = vsub.f32 %v70, %v542
    %v544 = vand.u32 %v543, 4294901760
    %545 = vmatpush1.msra.mxu0 %v544
    %546 = vmatprep.subr.mxu0 0.0
    %v547 = vand.u32 %v71, 4294901760
    %v548 = vsub.f32 %v71, %v547
    %v549 = vand.u32 %v548, 4294901760
    %550 = vmatpush1.msra.mxu0 %v549
    %551 = vmatprep.subr.mxu0 0.0
    %v552 = vand.u32 %v72, 4294901760
    %v553 = vsub.f32 %v72, %v552
    %v554 = vand.u32 %v553, 4294901760
    %555 = vmatpush1.msra.mxu0 %v554
    %556 = vmatprep.subr.mxu0 0.0
    %v557 = vand.u32 %v73, 4294901760
    %v558 = vsub.f32 %v73, %v557
    %v559 = vand.u32 %v558, 4294901760
    %560 = vmatpush1.msra.mxu0 %v559
    %561 = vmatprep.subr.mxu0 0.0
    %v562 = vand.u32 %v74, 4294901760
    %v563 = vsub.f32 %v74, %v562
    %v564 = vand.u32 %v563, 4294901760
    %565 = vmatpush1.msra.mxu0 %v564
    %566 = vmatprep.subr.mxu0 0.0
    %v567 = vand.u32 %v75, 4294901760
    %v568 = vsub.f32 %v75, %v567
    %v569 = vand.u32 %v568, 4294901760
    %570 = vmatpush1.msra.mxu0 %v569
    %571 = vmatprep.subr.mxu0 0.0
    %v572 = vand.u32 %v76, 4294901760
    %v573 = vsub.f32 %v76, %v572
    %v574 = vand.u32 %v573, 4294901760
    %575 = vmatpush1.msra.mxu0 %v574
    %576 = vmatprep.subr.mxu0 0.0
    %v577 = vand.u32 %v77, 4294901760
    %v578 = vsub.f32 %v77, %v577
    %v579 = vand.u32 %v578, 4294901760
    %580 = vmatpush1.msra.mxu0 %v579
    %581 = vmatprep.subr.mxu0 0.0
    %v582 = vand.u32 %v78, 4294901760
    %v583 = vsub.f32 %v78, %v582
    %v584 = vand.u32 %v583, 4294901760
    %585 = vmatpush1.msra.mxu0 %v584
    %586 = vmatprep.subr.mxu0 0.0
    %v587 = vand.u32 %v79, 4294901760
    %v588 = vsub.f32 %v79, %v587
    %v589 = vand.u32 %v588, 4294901760
    %590 = vmatpush1.msra.mxu0 %v589
    %591 = vmatprep.subr.mxu0 0.0
    %v592 = vand.u32 %v80, 4294901760
    %v593 = vsub.f32 %v80, %v592
    %v594 = vand.u32 %v593, 4294901760
    %595 = vmatpush1.msra.mxu0 %v594
    %596 = vmatprep.subr.mxu0 0.0
    %597 = vmatpush1.msra.mxu0 0.0
    %598 = vmatprep.subr.mxu0 0.0
    %599 = vmatpush1.msra.mxu0 0.0
    %600 = vmatprep.subr.mxu0 0.0
    %601 = vmatpush1.msra.mxu0 0.0
    %602 = vmatprep.subr.mxu0 0.0
    %603 = vmatpush1.msra.mxu0 0.0
    %604 = vmatprep.subr.mxu0 0.0
    %605 = vmatpush1.msra.mxu0 0.0
    %606 = vmatprep.subr.mxu0 0.0
    %607 = vmatpush1.msra.mxu0 0.0
    %608 = vmatprep.subr.mxu0 0.0
    %609 = vmatpush1.msra.mxu0 0.0
    %610 = vmatprep.subr.mxu0 0.0
    %611 = vmatpush1.msra.mxu0 0.0
    %612 = vmatprep.subr.mxu0 0.0
    %613 = vmatpush1.msra.mxu0 0.0
    %614 = vmatprep.subr.mxu0 0.0
    %615 = vmatpush1.msra.mxu0 0.0
    %616 = vmatprep.subr.mxu0 0.0
    %617 = vmatpush1.msra.mxu0 0.0
    %618 = vmatprep.subr.mxu0 0.0
    %619 = vmatpush1.msra.mxu0 0.0
    %620 = vmatprep.subr.mxu0 0.0
    %621 = vmatpush1.msra.mxu0 0.0
    %622 = vmatprep.subr.mxu0 0.0
    %623 = vmatpush1.msra.mxu0 0.0
    %624 = vmatprep.subr.mxu0 0.0
    %625 = vmatpush1.msra.mxu0 0.0
    %626 = vmatprep.subr.mxu0 0.0
    %627 = vmatpush1.msra.mxu0 0.0
    %628 = vmatprep.mubr.f32.mxu0 0.0
    %v629 = vand.u32 %v64, 4294901760
    %630 = vmatmul.mubr.f32.gmra.mrb[0].mxu0 %v629
    %v631 = vpop.f32.mrb[0].mxu0
    %v632 = vadd.f32 %v513, %v631
    %v633 = vpop.f32.mrb[0].mxu0
    %634 = vdwg.mxu0
    %635 = vmatprep.subr.mxu0 0.0
    %v636 = vand.u32 %v65, 4294901760
    %637 = vmatpush1.msra.mxu0 %v636
    %638 = vmatprep.subr.mxu0 0.0
    %v639 = vand.u32 %v66, 4294901760
    %640 = vmatpush1.msra.mxu0 %v639
    %641 = vmatprep.subr.mxu0 0.0
    %v642 = vand.u32 %v67, 4294901760
    %643 = vmatpush1.msra.mxu0 %v642
    %644 = vmatprep.subr.mxu0 0.0
    %v645 = vand.u32 %v68, 4294901760
    %646 = vmatpush1.msra.mxu0 %v645
    %647 = vmatprep.subr.mxu0 0.0
    %v648 = vand.u32 %v69, 4294901760
    %649 = vmatpush1.msra.mxu0 %v648
    %650 = vmatprep.subr.mxu0 0.0
    %v651 = vand.u32 %v70, 4294901760
    %652 = vmatpush1.msra.mxu0 %v651
    %653 = vmatprep.subr.mxu0 0.0
    %v654 = vand.u32 %v71, 4294901760
    %655 = vmatpush1.msra.mxu0 %v654
    %656 = vmatprep.subr.mxu0 0.0
    %v657 = vand.u32 %v72, 4294901760
    %658 = vmatpush1.msra.mxu0 %v657
    %659 = vmatprep.subr.mxu0 0.0
    %v660 = vand.u32 %v73, 4294901760
    %661 = vmatpush1.msra.mxu0 %v660
    %662 = vmatprep.subr.mxu0 0.0
    %v663 = vand.u32 %v74, 4294901760
    %664 = vmatpush1.msra.mxu0 %v663
    %665 = vmatprep.subr.mxu0 0.0
    %v666 = vand.u32 %v75, 4294901760
    %667 = vmatpush1.msra.mxu0 %v666
    %668 = vmatprep.subr.mxu0 0.0
    %v669 = vand.u32 %v76, 4294901760
    %670 = vmatpush1.msra.mxu0 %v669
    %671 = vmatprep.subr.mxu0 0.0
    %v672 = vand.u32 %v77, 4294901760
    %673 = vmatpush1.msra.mxu0 %v672
    %674 = vmatprep.subr.mxu0 0.0
    %v675 = vand.u32 %v78, 4294901760
    %676 = vmatpush1.msra.mxu0 %v675
    %677 = vmatprep.subr.mxu0 0.0
    %v678 = vand.u32 %v79, 4294901760
    %679 = vmatpush1.msra.mxu0 %v678
    %680 = vmatprep.subr.mxu0 0.0
    %v681 = vand.u32 %v80, 4294901760
    %682 = vmatpush1.msra.mxu0 %v681
    %683 = vmatprep.subr.mxu0 0.0
    %684 = vmatpush1.msra.mxu0 0.0
    %685 = vmatprep.subr.mxu0 0.0
    %686 = vmatpush1.msra.mxu0 0.0
    %687 = vmatprep.subr.mxu0 0.0
    %688 = vmatpush1.msra.mxu0 0.0
    %689 = vmatprep.subr.mxu0 0.0
    %690 = vmatpush1.msra.mxu0 0.0
    %691 = vmatprep.subr.mxu0 0.0
    %692 = vmatpush1.msra.mxu0 0.0
    %693 = vmatprep.subr.mxu0 0.0
    %694 = vmatpush1.msra.mxu0 0.0
    %695 = vmatprep.subr.mxu0 0.0
    %696 = vmatpush1.msra.mxu0 0.0
    %697 = vmatprep.subr.mxu0 0.0
    %698 = vmatpush1.msra.mxu0 0.0
    %699 = vmatprep.subr.mxu0 0.0
    %700 = vmatpush1.msra.mxu0 0.0
    %701 = vmatprep.subr.mxu0 0.0
    %702 = vmatpush1.msra.mxu0 0.0
    %703 = vmatprep.subr.mxu0 0.0
    %704 = vmatpush1.msra.mxu0 0.0
    %705 = vmatprep.subr.mxu0 0.0
    %706 = vmatpush1.msra.mxu0 0.0
    %707 = vmatprep.subr.mxu0 0.0
    %708 = vmatpush1.msra.mxu0 0.0
    %709 = vmatprep.subr.mxu0 0.0
    %710 = vmatpush1.msra.mxu0 0.0
    %711 = vmatprep.subr.mxu0 0.0
    %712 = vmatpush1.msra.mxu0 0.0
    %713 = vmatprep.subr.mxu0 0.0
    %714 = vmatpush1.msra.mxu0 0.0
    %715 = vmatprep.mubr.f32.mxu0 0.0
    %v716 = vand.u32 %v64, 4294901760
    %717 = vmatmul.mubr.f32.gmra.mrb[0].mxu0 %v716
    %v718 = vpop.f32.mrb[0].mxu0
    %v719 = vadd.f32 %v632, %v718
    %v720 = vpop.f32.mrb[0].mxu0
    %721 = vdwg.mxu0
    %v722 = vmax.f32 %v719, 0.0
    %v723 = vld [vmem:[#allocation5] sm:$0xff]
    %v724 = vld [vmem:[#allocation5 + $0x8] sm:$0xff]
    %v725 = vld [vmem:[#allocation5 + $0x10] sm:$0xff]
    %v726 = vld [vmem:[#allocation5 + $0x18] sm:$0xff]
    %v727 = vld [vmem:[#allocation5 + $0x20] sm:$0xff]
    %v728 = vld [vmem:[#allocation5 + $0x28] sm:$0xff]
    %v729 = vld [vmem:[#allocation5 + $0x30] sm:$0xff]
    %v730 = vld [vmem:[#allocation5 + $0x38] sm:$0xff]
    %v731 = vld [vmem:[#allocation5 + $0x40] sm:$0xff]
    %v732 = vld [vmem:[#allocation5 + $0x48] sm:$0xff]
    %v733 = vld [vmem:[#allocation5 + $0x50] sm:$0xff]
    %v734 = vld [vmem:[#allocation5 + $0x58] sm:$0xff]
    %v735 = vld [vmem:[#allocation5 + $0x60] sm:$0xff]
    %v736 = vld [vmem:[#allocation5 + $0x68] sm:$0xff]
    %v737 = vld [vmem:[#allocation5 + $0x70] sm:$0xff]
    %v738 = vld [vmem:[#allocation5 + $0x78] sm:$0xff]
    %v739 = vld [vmem:[%s3] sm:$0x1]
    %v741 = vlaneseq
    %v742 = vshrl.u32 %v741, 7
    %v743 = vsub.s32 0, %v742
    %v744 = vrot.slane %v739, %v743
    %746 = vmatprep.subr.mxu0 0.0
    %v747 = vand.u32 %v723, 4294901760
    %748 = vmatpush1.msra.mxu0 %v747
    %749 = vmatprep.subr.mxu0 0.0
    %v750 = vand.u32 %v724, 4294901760
    %751 = vmatpush1.msra.mxu0 %v750
    %752 = vmatprep.subr.mxu0 0.0
    %v753 = vand.u32 %v725, 4294901760
    %754 = vmatpush1.msra.mxu0 %v753
    %755 = vmatprep.subr.mxu0 0.0
    %v756 = vand.u32 %v726, 4294901760
    %757 = vmatpush1.msra.mxu0 %v756
    %758 = vmatprep.subr.mxu0 0.0
    %v759 = vand.u32 %v727, 4294901760
    %760 = vmatpush1.msra.mxu0 %v759
    %761 = vmatprep.subr.mxu0 0.0
    %v762 = vand.u32 %v728, 4294901760
    %763 = vmatpush1.msra.mxu0 %v762
    %764 = vmatprep.subr.mxu0 0.0
    %v765 = vand.u32 %v729, 4294901760
    %766 = vmatpush1.msra.mxu0 %v765
    %767 = vmatprep.subr.mxu0 0.0
    %v768 = vand.u32 %v730, 4294901760
    %769 = vmatpush1.msra.mxu0 %v768
    %770 = vmatprep.subr.mxu0 0.0
    %v771 = vand.u32 %v731, 4294901760
    %772 = vmatpush1.msra.mxu0 %v771
    %773 = vmatprep.subr.mxu0 0.0
    %v774 = vand.u32 %v732, 4294901760
    %775 = vmatpush1.msra.mxu0 %v774
    %776 = vmatprep.subr.mxu0 0.0
    %v777 = vand.u32 %v733, 4294901760
    %778 = vmatpush1.msra.mxu0 %v777
    %779 = vmatprep.subr.mxu0 0.0
    %v780 = vand.u32 %v734, 4294901760
    %781 = vmatpush1.msra.mxu0 %v780
    %782 = vmatprep.subr.mxu0 0.0
    %v783 = vand.u32 %v735, 4294901760
    %784 = vmatpush1.msra.mxu0 %v783
    %785 = vmatprep.subr.mxu0 0.0
    %v786 = vand.u32 %v736, 4294901760
    %787 = vmatpush1.msra.mxu0 %v786
    %788 = vmatprep.subr.mxu0 0.0
    %v789 = vand.u32 %v737, 4294901760
    %790 = vmatpush1.msra.mxu0 %v789
    %791 = vmatprep.subr.mxu0 0.0
    %v792 = vand.u32 %v738, 4294901760
    %793 = vmatpush1.msra.mxu0 %v792
    %794 = vmatprep.subr.mxu0 0.0
    %795 = vmatpush1.msra.mxu0 0.0
    %796 = vmatprep.subr.mxu0 0.0
    %797 = vmatpush1.msra.mxu0 0.0
    %798 = vmatprep.subr.mxu0 0.0
    %799 = vmatpush1.msra.mxu0 0.0
    %800 = vmatprep.subr.mxu0 0.0
    %801 = vmatpush1.msra.mxu0 0.0
    %802 = vmatprep.subr.mxu0 0.0
    %803 = vmatpush1.msra.mxu0 0.0
    %804 = vmatprep.subr.mxu0 0.0
    %805 = vmatpush1.msra.mxu0 0.0
    %806 = vmatprep.subr.mxu0 0.0
    %807 = vmatpush1.msra.mxu0 0.0
    %808 = vmatprep.subr.mxu0 0.0
    %809 = vmatpush1.msra.mxu0 0.0
    %810 = vmatprep.subr.mxu0 0.0
    %811 = vmatpush1.msra.mxu0 0.0
    %812 = vmatprep.subr.mxu0 0.0
    %813 = vmatpush1.msra.mxu0 0.0
    %814 = vmatprep.subr.mxu0 0.0
    %815 = vmatpush1.msra.mxu0 0.0
    %816 = vmatprep.subr.mxu0 0.0
    %817 = vmatpush1.msra.mxu0 0.0
    %818 = vmatprep.subr.mxu0 0.0
    %819 = vmatpush1.msra.mxu0 0.0
    %820 = vmatprep.subr.mxu0 0.0
    %821 = vmatpush1.msra.mxu0 0.0
    %822 = vmatprep.subr.mxu0 0.0
    %823 = vmatpush1.msra.mxu0 0.0
    %824 = vmatprep.subr.mxu0 0.0
    %825 = vmatpush1.msra.mxu0 0.0
    %826 = vmatprep.mubr.f32.mxu0 0.0
    %v827 = vand.u32 %v722, 4294901760
    %v828 = vsub.f32 %v722, %v827
    %v829 = vand.u32 %v828, 4294901760
    %v830 = vsub.f32 %v828, %v829
    %v831 = vand.u32 %v830, 4294901760
    %832 = vmatmul.mubr.f32.gmra.mrb[0].mxu0 %v831
    %v833 = vpop.f32.mrb[0].mxu0
    %v834 = vadd.f32 %v744, %v833
    %v835 = vpop.f32.mrb[0].mxu0
    %836 = vdwg.mxu0
    %837 = vmatprep.subr.mxu0 0.0
    %v838 = vand.u32 %v723, 4294901760
    %v839 = vsub.f32 %v723, %v838
    %v840 = vand.u32 %v839, 4294901760
    %v841 = vsub.f32 %v839, %v840
    %v842 = vand.u32 %v841, 4294901760
    %843 = vmatpush1.msra.mxu0 %v842
    %844 = vmatprep.subr.mxu0 0.0
    %v845 = vand.u32 %v724, 4294901760
    %v846 = vsub.f32 %v724, %v845
    %v847 = vand.u32 %v846, 4294901760
    %v848 = vsub.f32 %v846, %v847
    %v849 = vand.u32 %v848, 4294901760
    %850 = vmatpush1.msra.mxu0 %v849
    %851 = vmatprep.subr.mxu0 0.0
    %v852 = vand.u32 %v725, 4294901760
    %v853 = vsub.f32 %v725, %v852
    %v854 = vand.u32 %v853, 4294901760
    %v855 = vsub.f32 %v853, %v854
    %v856 = vand.u32 %v855, 4294901760
    %857 = vmatpush1.msra.mxu0 %v856
    %858 = vmatprep.subr.mxu0 0.0
    %v859 = vand.u32 %v726, 4294901760
    %v860 = vsub.f32 %v726, %v859
    %v861 = vand.u32 %v860, 4294901760
    %v862 = vsub.f32 %v860, %v861
    %v863 = vand.u32 %v862, 4294901760
    %864 = vmatpush1.msra.mxu0 %v863
    %865 = vmatprep.subr.mxu0 0.0
    %v866 = vand.u32 %v727, 4294901760
    %v867 = vsub.f32 %v727, %v866
    %v868 = vand.u32 %v867, 4294901760
    %v869 = vsub.f32 %v867, %v868
    %v870 = vand.u32 %v869, 4294901760
    %871 = vmatpush1.msra.mxu0 %v870
    %872 = vmatprep.subr.mxu0 0.0
    %v873 = vand.u32 %v728, 4294901760
    %v874 = vsub.f32 %v728, %v873
    %v875 = vand.u32 %v874, 4294901760
    %v876 = vsub.f32 %v874, %v875
    %v877 = vand.u32 %v876, 4294901760
    %878 = vmatpush1.msra.mxu0 %v877
    %879 = vmatprep.subr.mxu0 0.0
    %v880 = vand.u32 %v729, 4294901760
    %v881 = vsub.f32 %v729, %v880
    %v882 = vand.u32 %v881, 4294901760
    %v883 = vsub.f32 %v881, %v882
    %v884 = vand.u32 %v883, 4294901760
    %885 = vmatpush1.msra.mxu0 %v884
    %886 = vmatprep.subr.mxu0 0.0
    %v887 = vand.u32 %v730, 4294901760
    %v888 = vsub.f32 %v730, %v887
    %v889 = vand.u32 %v888, 4294901760
    %v890 = vsub.f32 %v888, %v889
    %v891 = vand.u32 %v890, 4294901760
    %892 = vmatpush1.msra.mxu0 %v891
    %893 = vmatprep.subr.mxu0 0.0
    %v894 = vand.u32 %v731, 4294901760
    %v895 = vsub.f32 %v731, %v894
    %v896 = vand.u32 %v895, 4294901760
    %v897 = vsub.f32 %v895, %v896
    %v898 = vand.u32 %v897, 4294901760
    %899 = vmatpush1.msra.mxu0 %v898
    %900 = vmatprep.subr.mxu0 0.0
    %v901 = vand.u32 %v732, 4294901760
    %v902 = vsub.f32 %v732, %v901
    %v903 = vand.u32 %v902, 4294901760
    %v904 = vsub.f32 %v902, %v903
    %v905 = vand.u32 %v904, 4294901760
    %906 = vmatpush1.msra.mxu0 %v905
    %907 = vmatprep.subr.mxu0 0.0
    %v908 = vand.u32 %v733, 4294901760
    %v909 = vsub.f32 %v733, %v908
    %v910 = vand.u32 %v909, 4294901760
    %v911 = vsub.f32 %v909, %v910
    %v912 = vand.u32 %v911, 4294901760
    %913 = vmatpush1.msra.mxu0 %v912
    %914 = vmatprep.subr.mxu0 0.0
    %v915 = vand.u32 %v734, 4294901760
    %v916 = vsub.f32 %v734, %v915
    %v917 = vand.u32 %v916, 4294901760
    %v918 = vsub.f32 %v916, %v917
    %v919 = vand.u32 %v918, 4294901760
    %920 = vmatpush1.msra.mxu0 %v919
    %921 = vmatprep.subr.mxu0 0.0
    %v922 = vand.u32 %v735, 4294901760
    %v923 = vsub.f32 %v735, %v922
    %v924 = vand.u32 %v923, 4294901760
    %v925 = vsub.f32 %v923, %v924
    %v926 = vand.u32 %v925, 4294901760
    %927 = vmatpush1.msra.mxu0 %v926
    %928 = vmatprep.subr.mxu0 0.0
    %v929 = vand.u32 %v736, 4294901760
    %v930 = vsub.f32 %v736, %v929
    %v931 = vand.u32 %v930, 4294901760
    %v932 = vsub.f32 %v930, %v931
    %v933 = vand.u32 %v932, 4294901760
    %934 = vmatpush1.msra.mxu0 %v933
    %935 = vmatprep.subr.mxu0 0.0
    %v936 = vand.u32 %v737, 4294901760
    %v937 = vsub.f32 %v737, %v936
    %v938 = vand.u32 %v937, 4294901760
    %v939 = vsub.f32 %v937, %v938
    %v940 = vand.u32 %v939, 4294901760
    %941 = vmatpush1.msra.mxu0 %v940
    %942 = vmatprep.subr.mxu0 0.0
    %v943 = vand.u32 %v738, 4294901760
    %v944 = vsub.f32 %v738, %v943
    %v945 = vand.u32 %v944, 4294901760
    %v946 = vsub.f32 %v944, %v945
    %v947 = vand.u32 %v946, 4294901760
    %948 = vmatpush1.msra.mxu0 %v947
    %949 = vmatprep.subr.mxu0 0.0
    %950 = vmatpush1.msra.mxu0 0.0
    %951 = vmatprep.subr.mxu0 0.0
    %952 = vmatpush1.msra.mxu0 0.0
    %953 = vmatprep.subr.mxu0 0.0
    %954 = vmatpush1.msra.mxu0 0.0
    %955 = vmatprep.subr.mxu0 0.0
    %956 = vmatpush1.msra.mxu0 0.0
    %957 = vmatprep.subr.mxu0 0.0
    %958 = vmatpush1.msra.mxu0 0.0
    %959 = vmatprep.subr.mxu0 0.0
    %960 = vmatpush1.msra.mxu0 0.0
    %961 = vmatprep.subr.mxu0 0.0
    %962 = vmatpush1.msra.mxu0 0.0
    %963 = vmatprep.subr.mxu0 0.0
    %964 = vmatpush1.msra.mxu0 0.0
    %965 = vmatprep.subr.mxu0 0.0
    %966 = vmatpush1.msra.mxu0 0.0
    %967 = vmatprep.subr.mxu0 0.0
    %968 = vmatpush1.msra.mxu0 0.0
    %969 = vmatprep.subr.mxu0 0.0
    %970 = vmatpush1.msra.mxu0 0.0
    %971 = vmatprep.subr.mxu0 0.0
    %972 = vmatpush1.msra.mxu0 0.0
    %973 = vmatprep.subr.mxu0 0.0
    %974 = vmatpush1.msra.mxu0 0.0
    %975 = vmatprep.subr.mxu0 0.0
    %976 = vmatpush1.msra.mxu0 0.0
    %977 = vmatprep.subr.mxu0 0.0
    %978 = vmatpush1.msra.mxu0 0.0
    %979 = vmatprep.subr.mxu0 0.0
    %980 = vmatpush1.msra.mxu0 0.0
    %981 = vmatprep.mubr.f32.mxu0 0.0
    %v982 = vand.u32 %v722, 4294901760
    %983 = vmatmul.mubr.f32.gmra.mrb[0].mxu0 %v982
    %v984 = vpop.f32.mrb[0].mxu0
    %v985 = vadd.f32 %v834, %v984
    %v986 = vpop.f32.mrb[0].mxu0
    %987 = vdwg.mxu0
    %988 = vmatprep.subr.mxu0 0.0
    %v989 = vand.u32 %v723, 4294901760
    %v990 = vsub.f32 %v723, %v989
    %991 = vmatpush1.msra.mxu0 %v990
    %992 = vmatprep.subr.mxu0 0.0
    %v993 = vand.u32 %v724, 4294901760
    %v994 = vsub.f32 %v724, %v993
    %995 = vmatpush1.msra.mxu0 %v994
    %996 = vmatprep.subr.mxu0 0.0
    %v997 = vand.u32 %v725, 4294901760
    %v998 = vsub.f32 %v725, %v997
    %999 = vmatpush1.msra.mxu0 %v998
    %1000 = vmatprep.subr.mxu0 0.0
    %v1001 = vand.u32 %v726, 4294901760
    %v1002 = vsub.f32 %v726, %v1001
    %1003 = vmatpush1.msra.mxu0 %v1002
    %1004 = vmatprep.subr.mxu0 0.0
    %v1005 = vand.u32 %v727, 4294901760
    %v1006 = vsub.f32 %v727, %v1005
    %1007 = vmatpush1.msra.mxu0 %v1006
    %1008 = vmatprep.subr.mxu0 0.0
    %v1009 = vand.u32 %v728, 4294901760
    %v1010 = vsub.f32 %v728, %v1009
    %1011 = vmatpush1.msra.mxu0 %v1010
    %1012 = vmatprep.subr.mxu0 0.0
    %v1013 = vand.u32 %v729, 4294901760
    %v1014 = vsub.f32 %v729, %v1013
    %1015 = vmatpush1.msra.mxu0 %v1014
    %1016 = vmatprep.subr.mxu0 0.0
    %v1017 = vand.u32 %v730, 4294901760
    %v1018 = vsub.f32 %v730, %v1017
    %1019 = vmatpush1.msra.mxu0 %v1018
    %1020 = vmatprep.subr.mxu0 0.0
    %v1021 = vand.u32 %v731, 4294901760
    %v1022 = vsub.f32 %v731, %v1021
    %1023 = vmatpush1.msra.mxu0 %v1022
    %1024 = vmatprep.subr.mxu0 0.0
    %v1025 = vand.u32 %v732, 4294901760
    %v1026 = vsub.f32 %v732, %v1025
    %1027 = vmatpush1.msra.mxu0 %v1026
    %1028 = vmatprep.subr.mxu0 0.0
    %v1029 = vand.u32 %v733, 4294901760
    %v1030 = vsub.f32 %v733, %v1029
    %1031 = vmatpush1.msra.mxu0 %v1030
    %1032 = vmatprep.subr.mxu0 0.0
    %v1033 = vand.u32 %v734, 4294901760
    %v1034 = vsub.f32 %v734, %v1033
    %1035 = vmatpush1.msra.mxu0 %v1034
    %1036 = vmatprep.subr.mxu0 0.0
    %v1037 = vand.u32 %v735, 4294901760
    %v1038 = vsub.f32 %v735, %v1037
    %1039 = vmatpush1.msra.mxu0 %v1038
    %1040 = vmatprep.subr.mxu0 0.0
    %v1041 = vand.u32 %v736, 4294901760
    %v1042 = vsub.f32 %v736, %v1041
    %1043 = vmatpush1.msra.mxu0 %v1042
    %1044 = vmatprep.subr.mxu0 0.0
    %v1045 = vand.u32 %v737, 4294901760
    %v1046 = vsub.f32 %v737, %v1045
    %1047 = vmatpush1.msra.mxu0 %v1046
    %1048 = vmatprep.subr.mxu0 0.0
    %v1049 = vand.u32 %v738, 4294901760
    %v1050 = vsub.f32 %v738, %v1049
    %1051 = vmatpush1.msra.mxu0 %v1050
    %1052 = vmatprep.subr.mxu0 0.0
    %1053 = vmatpush1.msra.mxu0 0.0
    %1054 = vmatprep.subr.mxu0 0.0
    %1055 = vmatpush1.msra.mxu0 0.0
    %1056 = vmatprep.subr.mxu0 0.0
    %1057 = vmatpush1.msra.mxu0 0.0
    %1058 = vmatprep.subr.mxu0 0.0
    %1059 = vmatpush1.msra.mxu0 0.0
    %1060 = vmatprep.subr.mxu0 0.0
    %1061 = vmatpush1.msra.mxu0 0.0
    %1062 = vmatprep.subr.mxu0 0.0
    %1063 = vmatpush1.msra.mxu0 0.0
    %1064 = vmatprep.subr.mxu0 0.0
    %1065 = vmatpush1.msra.mxu0 0.0
    %1066 = vmatprep.subr.mxu0 0.0
    %1067 = vmatpush1.msra.mxu0 0.0
    %1068 = vmatprep.subr.mxu0 0.0
    %1069 = vmatpush1.msra.mxu0 0.0
    %1070 = vmatprep.subr.mxu0 0.0
    %1071 = vmatpush1.msra.mxu0 0.0
    %1072 = vmatprep.subr.mxu0 0.0
    %1073 = vmatpush1.msra.mxu0 0.0
    %1074 = vmatprep.subr.mxu0 0.0
    %1075 = vmatpush1.msra.mxu0 0.0
    %1076 = vmatprep.subr.mxu0 0.0
    %1077 = vmatpush1.msra.mxu0 0.0
    %1078 = vmatprep.subr.mxu0 0.0
    %1079 = vmatpush1.msra.mxu0 0.0
    %1080 = vmatprep.subr.mxu0 0.0
    %1081 = vmatpush1.msra.mxu0 0.0
    %1082 = vmatprep.subr.mxu0 0.0
    %1083 = vmatpush1.msra.mxu0 0.0
    %1084 = vmatprep.mubr.f32.mxu0 0.0
    %v1085 = vand.u32 %v722, 4294901760
    %v1086 = vsub.f32 %v722, %v1085
    %1087 = vmatmul.mubr.f32.gmra.mrb[0].mxu0 %v1086
    %v1088 = vpop.f32.mrb[0].mxu0
    %v1089 = vadd.f32 %v985, %v1088
    %v1090 = vpop.f32.mrb[0].mxu0
    %1091 = vdwg.mxu0
    %1092 = vmatprep.subr.mxu0 0.0
    %v1093 = vand.u32 %v723, 4294901760
    %1094 = vmatpush1.msra.mxu0 %v1093
    %1095 = vmatprep.subr.mxu0 0.0
    %v1096 = vand.u32 %v724, 4294901760
    %1097 = vmatpush1.msra.mxu0 %v1096
    %1098 = vmatprep.subr.mxu0 0.0
    %v1099 = vand.u32 %v725, 4294901760
    %1100 = vmatpush1.msra.mxu0 %v1099
    %1101 = vmatprep.subr.mxu0 0.0
    %v1102 = vand.u32 %v726, 4294901760
    %1103 = vmatpush1.msra.mxu0 %v1102
    %1104 = vmatprep.subr.mxu0 0.0
    %v1105 = vand.u32 %v727, 4294901760
    %1106 = vmatpush1.msra.mxu0 %v1105
    %1107 = vmatprep.subr.mxu0 0.0
    %v1108 = vand.u32 %v728, 4294901760
    %1109 = vmatpush1.msra.mxu0 %v1108
    %1110 = vmatprep.subr.mxu0 0.0
    %v1111 = vand.u32 %v729, 4294901760
    %1112 = vmatpush1.msra.mxu0 %v1111
    %1113 = vmatprep.subr.mxu0 0.0
    %v1114 = vand.u32 %v730, 4294901760
    %1115 = vmatpush1.msra.mxu0 %v1114
    %1116 = vmatprep.subr.mxu0 0.0
    %v1117 = vand.u32 %v731, 4294901760
    %1118 = vmatpush1.msra.mxu0 %v1117
    %1119 = vmatprep.subr.mxu0 0.0
    %v1120 = vand.u32 %v732, 4294901760
    %1121 = vmatpush1.msra.mxu0 %v1120
    %1122 = vmatprep.subr.mxu0 0.0
    %v1123 = vand.u32 %v733, 4294901760
    %1124 = vmatpush1.msra.mxu0 %v1123
    %1125 = vmatprep.subr.mxu0 0.0
    %v1126 = vand.u32 %v734, 4294901760
    %1127 = vmatpush1.msra.mxu0 %v1126
    %1128 = vmatprep.subr.mxu0 0.0
    %v1129 = vand.u32 %v735, 4294901760
    %1130 = vmatpush1.msra.mxu0 %v1129
    %1131 = vmatprep.subr.mxu0 0.0
    %v1132 = vand.u32 %v736, 4294901760
    %1133 = vmatpush1.msra.mxu0 %v1132
    %1134 = vmatprep.subr.mxu0 0.0
    %v1135 = vand.u32 %v737, 4294901760
    %1136 = vmatpush1.msra.mxu0 %v1135
    %1137 = vmatprep.subr.mxu0 0.0
    %v1138 = vand.u32 %v738, 4294901760
    %1139 = vmatpush1.msra.mxu0 %v1138
    %1140 = vmatprep.subr.mxu0 0.0
    %1141 = vmatpush1.msra.mxu0 0.0
    %1142 = vmatprep.subr.mxu0 0.0
    %1143 = vmatpush1.msra.mxu0 0.0
    %1144 = vmatprep.subr.mxu0 0.0
    %1145 = vmatpush1.msra.mxu0 0.0
    %1146 = vmatprep.subr.mxu0 0.0
    %1147 = vmatpush1.msra.mxu0 0.0
    %1148 = vmatprep.subr.mxu0 0.0
    %1149 = vmatpush1.msra.mxu0 0.0
    %1150 = vmatprep.subr.mxu0 0.0
    %1151 = vmatpush1.msra.mxu0 0.0
    %1152 = vmatprep.subr.mxu0 0.0
    %1153 = vmatpush1.msra.mxu0 0.0
    %1154 = vmatprep.subr.mxu0 0.0
    %1155 = vmatpush1.msra.mxu0 0.0
    %1156 = vmatprep.subr.mxu0 0.0
    %1157 = vmatpush1.msra.mxu0 0.0
    %1158 = vmatprep.subr.mxu0 0.0
    %1159 = vmatpush1.msra.mxu0 0.0
    %1160 = vmatprep.subr.mxu0 0.0
    %1161 = vmatpush1.msra.mxu0 0.0
    %1162 = vmatprep.subr.mxu0 0.0
    %1163 = vmatpush1.msra.mxu0 0.0
    %1164 = vmatprep.subr.mxu0 0.0
    %1165 = vmatpush1.msra.mxu0 0.0
    %1166 = vmatprep.subr.mxu0 0.0
    %1167 = vmatpush1.msra.mxu0 0.0
    %1168 = vmatprep.subr.mxu0 0.0
    %1169 = vmatpush1.msra.mxu0 0.0
    %1170 = vmatprep.subr.mxu0 0.0
    %1171 = vmatpush1.msra.mxu0 0.0
    %1172 = vmatprep.mubr.f32.mxu0 0.0
    %v1173 = vand.u32 %v722, 4294901760
    %v1174 = vsub.f32 %v722, %v1173
    %v1175 = vand.u32 %v1174, 4294901760
    %1176 = vmatmul.mubr.f32.gmra.mrb[0].mxu0 %v1175
    %v1177 = vpop.f32.mrb[0].mxu0
    %v1178 = vadd.f32 %v1089, %v1177
    %v1179 = vpop.f32.mrb[0].mxu0
    %1180 = vdwg.mxu0
    %1181 = vmatprep.subr.mxu0 0.0
    %v1182 = vand.u32 %v723, 4294901760
    %v1183 = vsub.f32 %v723, %v1182
    %v1184 = vand.u32 %v1183, 4294901760
    %1185 = vmatpush1.msra.mxu0 %v1184
    %1186 = vmatprep.subr.mxu0 0.0
    %v1187 = vand.u32 %v724, 4294901760
    %v1188 = vsub.f32 %v724, %v1187
    %v1189 = vand.u32 %v1188, 4294901760
    %1190 = vmatpush1.msra.mxu0 %v1189
    %1191 = vmatprep.subr.mxu0 0.0
    %v1192 = vand.u32 %v725, 4294901760
    %v1193 = vsub.f32 %v725, %v1192
    %v1194 = vand.u32 %v1193, 4294901760
    %1195 = vmatpush1.msra.mxu0 %v1194
    %1196 = vmatprep.subr.mxu0 0.0
    %v1197 = vand.u32 %v726, 4294901760
    %v1198 = vsub.f32 %v726, %v1197
    %v1199 = vand.u32 %v1198, 4294901760
    %1200 = vmatpush1.msra.mxu0 %v1199
    %1201 = vmatprep.subr.mxu0 0.0
    %v1202 = vand.u32 %v727, 4294901760
    %v1203 = vsub.f32 %v727, %v1202
    %v1204 = vand.u32 %v1203, 4294901760
    %1205 = vmatpush1.msra.mxu0 %v1204
    %1206 = vmatprep.subr.mxu0 0.0
    %v1207 = vand.u32 %v728, 4294901760
    %v1208 = vsub.f32 %v728, %v1207
    %v1209 = vand.u32 %v1208, 4294901760
    %1210 = vmatpush1.msra.mxu0 %v1209
    %1211 = vmatprep.subr.mxu0 0.0
    %v1212 = vand.u32 %v729, 4294901760
    %v1213 = vsub.f32 %v729, %v1212
    %v1214 = vand.u32 %v1213, 4294901760
    %1215 = vmatpush1.msra.mxu0 %v1214
    %1216 = vmatprep.subr.mxu0 0.0
    %v1217 = vand.u32 %v730, 4294901760
    %v1218 = vsub.f32 %v730, %v1217
    %v1219 = vand.u32 %v1218, 4294901760
    %1220 = vmatpush1.msra.mxu0 %v1219
    %1221 = vmatprep.subr.mxu0 0.0
    %v1222 = vand.u32 %v731, 4294901760
    %v1223 = vsub.f32 %v731, %v1222
    %v1224 = vand.u32 %v1223, 4294901760
    %1225 = vmatpush1.msra.mxu0 %v1224
    %1226 = vmatprep.subr.mxu0 0.0
    %v1227 = vand.u32 %v732, 4294901760
    %v1228 = vsub.f32 %v732, %v1227
    %v1229 = vand.u32 %v1228, 4294901760
    %1230 = vmatpush1.msra.mxu0 %v1229
    %1231 = vmatprep.subr.mxu0 0.0
    %v1232 = vand.u32 %v733, 4294901760
    %v1233 = vsub.f32 %v733, %v1232
    %v1234 = vand.u32 %v1233, 4294901760
    %1235 = vmatpush1.msra.mxu0 %v1234
    %1236 = vmatprep.subr.mxu0 0.0
    %v1237 = vand.u32 %v734, 4294901760
    %v1238 = vsub.f32 %v734, %v1237
    %v1239 = vand.u32 %v1238, 4294901760
    %1240 = vmatpush1.msra.mxu0 %v1239
    %1241 = vmatprep.subr.mxu0 0.0
    %v1242 = vand.u32 %v735, 4294901760
    %v1243 = vsub.f32 %v735, %v1242
    %v1244 = vand.u32 %v1243, 4294901760
    %1245 = vmatpush1.msra.mxu0 %v1244
    %1246 = vmatprep.subr.mxu0 0.0
    %v1247 = vand.u32 %v736, 4294901760
    %v1248 = vsub.f32 %v736, %v1247
    %v1249 = vand.u32 %v1248, 4294901760
    %1250 = vmatpush1.msra.mxu0 %v1249
    %1251 = vmatprep.subr.mxu0 0.0
    %v1252 = vand.u32 %v737, 4294901760
    %v1253 = vsub.f32 %v737, %v1252
    %v1254 = vand.u32 %v1253, 4294901760
    %1255 = vmatpush1.msra.mxu0 %v1254
    %1256 = vmatprep.subr.mxu0 0.0
    %v1257 = vand.u32 %v738, 4294901760
    %v1258 = vsub.f32 %v738, %v1257
    %v1259 = vand.u32 %v1258, 4294901760
    %1260 = vmatpush1.msra.mxu0 %v1259
    %1261 = vmatprep.subr.mxu0 0.0
    %1262 = vmatpush1.msra.mxu0 0.0
    %1263 = vmatprep.subr.mxu0 0.0
    %1264 = vmatpush1.msra.mxu0 0.0
    %1265 = vmatprep.subr.mxu0 0.0
    %1266 = vmatpush1.msra.mxu0 0.0
    %1267 = vmatprep.subr.mxu0 0.0
    %1268 = vmatpush1.msra.mxu0 0.0
    %1269 = vmatprep.subr.mxu0 0.0
    %1270 = vmatpush1.msra.mxu0 0.0
    %1271 = vmatprep.subr.mxu0 0.0
    %1272 = vmatpush1.msra.mxu0 0.0
    %1273 = vmatprep.subr.mxu0 0.0
    %1274 = vmatpush1.msra.mxu0 0.0
    %1275 = vmatprep.subr.mxu0 0.0
    %1276 = vmatpush1.msra.mxu0 0.0
    %1277 = vmatprep.subr.mxu0 0.0
    %1278 = vmatpush1.msra.mxu0 0.0
    %1279 = vmatprep.subr.mxu0 0.0
    %1280 = vmatpush1.msra.mxu0 0.0
    %1281 = vmatprep.subr.mxu0 0.0
    %1282 = vmatpush1.msra.mxu0 0.0
    %1283 = vmatprep.subr.mxu0 0.0
    %1284 = vmatpush1.msra.mxu0 0.0
    %1285 = vmatprep.subr.mxu0 0.0
    %1286 = vmatpush1.msra.mxu0 0.0
    %1287 = vmatprep.subr.mxu0 0.0
    %1288 = vmatpush1.msra.mxu0 0.0
    %1289 = vmatprep.subr.mxu0 0.0
    %1290 = vmatpush1.msra.mxu0 0.0
    %1291 = vmatprep.subr.mxu0 0.0
    %1292 = vmatpush1.msra.mxu0 0.0
    %1293 = vmatprep.mubr.f32.mxu0 0.0
    %v1294 = vand.u32 %v722, 4294901760
    %1295 = vmatmul.mubr.f32.gmra.mrb[0].mxu0 %v1294
    %v1296 = vpop.f32.mrb[0].mxu0
    %v1297 = vadd.f32 %v1178, %v1296
    %v1298 = vpop.f32.mrb[0].mxu0
    %1299 = vdwg.mxu0
    %1300 = vmatprep.subr.mxu0 0.0
    %v1301 = vand.u32 %v723, 4294901760
    %1302 = vmatpush1.msra.mxu0 %v1301
    %1303 = vmatprep.subr.mxu0 0.0
    %v1304 = vand.u32 %v724, 4294901760
    %1305 = vmatpush1.msra.mxu0 %v1304
    %1306 = vmatprep.subr.mxu0 0.0
    %v1307 = vand.u32 %v725, 4294901760
    %1308 = vmatpush1.msra.mxu0 %v1307
    %1309 = vmatprep.subr.mxu0 0.0
    %v1310 = vand.u32 %v726, 4294901760
    %1311 = vmatpush1.msra.mxu0 %v1310
    %1312 = vmatprep.subr.mxu0 0.0
    %v1313 = vand.u32 %v727, 4294901760
    %1314 = vmatpush1.msra.mxu0 %v1313
    %1315 = vmatprep.subr.mxu0 0.0
    %v1316 = vand.u32 %v728, 4294901760
    %1317 = vmatpush1.msra.mxu0 %v1316
    %1318 = vmatprep.subr.mxu0 0.0
    %v1319 = vand.u32 %v729, 4294901760
    %1320 = vmatpush1.msra.mxu0 %v1319
    %1321 = vmatprep.subr.mxu0 0.0
    %v1322 = vand.u32 %v730, 4294901760
    %1323 = vmatpush1.msra.mxu0 %v1322
    %1324 = vmatprep.subr.mxu0 0.0
    %v1325 = vand.u32 %v731, 4294901760
    %1326 = vmatpush1.msra.mxu0 %v1325
    %1327 = vmatprep.subr.mxu0 0.0
    %v1328 = vand.u32 %v732, 4294901760
    %1329 = vmatpush1.msra.mxu0 %v1328
    %1330 = vmatprep.subr.mxu0 0.0
    %v1331 = vand.u32 %v733, 4294901760
    %1332 = vmatpush1.msra.mxu0 %v1331
    %1333 = vmatprep.subr.mxu0 0.0
    %v1334 = vand.u32 %v734, 4294901760
    %1335 = vmatpush1.msra.mxu0 %v1334
    %1336 = vmatprep.subr.mxu0 0.0
    %v1337 = vand.u32 %v735, 4294901760
    %1338 = vmatpush1.msra.mxu0 %v1337
    %1339 = vmatprep.subr.mxu0 0.0
    %v1340 = vand.u32 %v736, 4294901760
    %1341 = vmatpush1.msra.mxu0 %v1340
    %1342 = vmatprep.subr.mxu0 0.0
    %v1343 = vand.u32 %v737, 4294901760
    %1344 = vmatpush1.msra.mxu0 %v1343
    %1345 = vmatprep.subr.mxu0 0.0
    %v1346 = vand.u32 %v738, 4294901760
    %1347 = vmatpush1.msra.mxu0 %v1346
    %1348 = vmatprep.subr.mxu0 0.0
    %1349 = vmatpush1.msra.mxu0 0.0
    %1350 = vmatprep.subr.mxu0 0.0
    %1351 = vmatpush1.msra.mxu0 0.0
    %1352 = vmatprep.subr.mxu0 0.0
    %1353 = vmatpush1.msra.mxu0 0.0
    %1354 = vmatprep.subr.mxu0 0.0
    %1355 = vmatpush1.msra.mxu0 0.0
    %1356 = vmatprep.subr.mxu0 0.0
    %1357 = vmatpush1.msra.mxu0 0.0
    %1358 = vmatprep.subr.mxu0 0.0
    %1359 = vmatpush1.msra.mxu0 0.0
    %1360 = vmatprep.subr.mxu0 0.0
    %1361 = vmatpush1.msra.mxu0 0.0
    %1362 = vmatprep.subr.mxu0 0.0
    %1363 = vmatpush1.msra.mxu0 0.0
    %1364 = vmatprep.subr.mxu0 0.0
    %1365 = vmatpush1.msra.mxu0 0.0
    %1366 = vmatprep.subr.mxu0 0.0
    %1367 = vmatpush1.msra.mxu0 0.0
    %1368 = vmatprep.subr.mxu0 0.0
    %1369 = vmatpush1.msra.mxu0 0.0
    %1370 = vmatprep.subr.mxu0 0.0
    %1371 = vmatpush1.msra.mxu0 0.0
    %1372 = vmatprep.subr.mxu0 0.0
    %1373 = vmatpush1.msra.mxu0 0.0
    %1374 = vmatprep.subr.mxu0 0.0
    %1375 = vmatpush1.msra.mxu0 0.0
    %1376 = vmatprep.subr.mxu0 0.0
    %1377 = vmatpush1.msra.mxu0 0.0
    %1378 = vmatprep.subr.mxu0 0.0
    %1379 = vmatpush1.msra.mxu0 0.0
    %1380 = vmatprep.mubr.f32.mxu0 0.0
    %v1381 = vand.u32 %v722, 4294901760
    %1382 = vmatmul.mubr.f32.gmra.mrb[0].mxu0 %v1381
    %v1383 = vpop.f32.mrb[0].mxu0
    %v1384 = vadd.f32 %v1297, %v1383
    %v1385 = vpop.f32.mrb[0].mxu0
    %1386 = vdwg.mxu0
    %v1387 = vxor.u32 %v1384, 2147483648
    %v1388 = vmul.f32 %v1387, 1.442695
    %v1389 = vpow.pop %v1388
    %v1390 = vadd.f32 %v1389, 1.0
    %v1391 = vrcp.pop %v1390
    %v1392 = vmul.f32 1.0, %v1391
    %vm1393 = vcmask 64512
    %1394 = vst.msk [vmem:[#allocation7] sm:$0xff] %vm1393, %v1392
    // Predicated region
    $region26: #{tpu_custom_call.1} parent=1 // pred_check
      _
    $region27: #{tpu_custom_call.1} parent=1 // pred_check_branch
      %1396 = sbr.rel (0) target = $region29
    $region28: #{tpu_custom_call.1} parent=1 // pred_region
      %s1398 = ssub.s32 128, 128
      %1399 = vsyncadd [#allocation4], %s1398
      %s1401 = sshll.u32 [#allocation7], 4
      %s1402 = int_to_ptr.vmem [resolvable:$true] %s1401
      %1404 = dma.vmem_to_hbm [thread:$0]  %s1402, 128, %s4, [#allocation4]
    $region29: #{tpu_custom_call.1} parent=1 // pred_fallthru
      _
    // Predicated region
    $region30: #{tpu_custom_call.1} parent=1 // pred_check
      _
    $region31: #{tpu_custom_call.1} parent=1 // pred_check_branch
      %1406 = sbr.rel (0) target = $region33
    $region32: #{tpu_custom_call.1} parent=1 // pred_region
      %1407 = dma.done [#allocation4], 128
    $region33: #{tpu_custom_call.1} parent=1 // pred_fallthru
      _
    %1408 = vsyncpa [#allocation3], 1
    %1409 = vsyncpa [#allocation6], 1
    %1410 = vsyncpa [#allocation4], 1

</llo_original>
